<compile_context>
chip_gen: v7x
topology: tpu7x:2x2x1
jax: 0.10.0
libtpu: 0.0.40
codegen_flags: <defaults>
</compile_context>

<pallas_src>
import functools

import jax
import jax.numpy as jnp
from jax.experimental import pallas as pl
from jax.experimental.pallas import tpu as pltpu

LRELU_SLOPE = 0.3
EPS = 1e-5


# ----------------------------------------------------------------------------
# Fused kernel (one grid step = one (batch, time-tile))
# ----------------------------------------------------------------------------
def _fused_kernel(T_real, TT, D, E, K, PAD, HALO, F, G,
                  xc_ref, xprev_ref, xnext_ref, g_ref, b_ref,
                  dww_ref, dwb_ref, ow_ref, ob_ref,
                  o_ref, win_ref):
    t = pl.program_id(1)

    gamma = g_ref[...].astype(jnp.float32)                     # (1, D)
    beta = b_ref[...].astype(jnp.float32)                      # (1, D)

    def layernorm(v):                                          # (R, D) -> (R, D) f32
        v = v.astype(jnp.float32)
        mu = jnp.mean(v, axis=-1, keepdims=True)
        var = jnp.mean((v - mu) ** 2, axis=-1, keepdims=True)
        return (v - mu) * jax.lax.rsqrt(var + EPS) * gamma + beta

    def rep_lanes(v):                                          # (R, D) -> (R, F*D)
        return jnp.concatenate([v] * F, axis=-1) if F > 1 else v

    # ---- per-tile LayerNorm (no cross-tile dependency) ----------------------
    # current tile: global rows [t*TT, t*TT + TT); rows >= T_real are padding
    # and must be zero post-LN (conv "same" padding semantics).
    rows_c = jax.lax.broadcasted_iota(jnp.int32, (TT, 1), 0) + t * TT
    xc = layernorm(xc_ref[0])
    xc = jnp.where(rows_c < T_real, xc, 0.0)
    win_ref[HALO:HALO + TT, :] = rep_lanes(xc)                 # aligned bulk store

    # leading halo: last PAD rows of the previous tile (zero when t == 0)
    rows_p = jax.lax.broadcasted_iota(jnp.int32, (PAD, 1), 0) + (t * TT - PAD)
    hp = layernorm(xprev_ref[0][8 - PAD:, :])
    hp = jnp.where((rows_p >= 0) & (rows_p < T_real), hp, 0.0)
    win_ref[HALO - PAD:HALO, :] = rep_lanes(hp)

    # trailing halo: first PAD rows of the next tile (zero past T_real)
    rows_n = jax.lax.broadcasted_iota(jnp.int32, (PAD, 1), 0) + (t + 1) * TT
    hn = layernorm(xnext_ref[0][:PAD, :])
    hn = jnp.where(rows_n < T_real, hn, 0.0)
    win_ref[HALO + TT:HALO + TT + PAD, :] = rep_lanes(hn)

    # ---- depthwise conv (VPU) + LeakyReLU, expansion folded into lanes ------
    dww = dww_ref[...].astype(jnp.float32)                     # (G, K, F*D)
    dwb = dwb_ref[...].astype(jnp.float32)                     # (G, F*D)

    pieces = []
    for g in range(G):                                         # static unroll
        acc = jnp.zeros((TT, F * D), jnp.float32)
        for k in range(K):                                     # static unroll
            # re-slice the shifted window from VMEM each tap (no hoisted vregs)
            shift = win_ref[HALO - PAD + k:HALO - PAD + k + TT, :]
            acc = acc + shift * dww[g, k]
        acc = acc + dwb[g]
        acc = jnp.where(acc >= 0, acc, acc * LRELU_SLOPE)      # LeakyReLU(0.3)
        pieces.append(acc)
    h = jnp.concatenate(pieces, axis=-1) if G > 1 else pieces[0]   # (TT, E*D)

    # ---- fused pointwise 1x1 conv: ONE bf16 MXU pass, f32 accumulation ------
    out = jnp.dot(h.astype(jnp.bfloat16), ow_ref[...],
                  preferred_element_type=jnp.float32)
    out = out + ob_ref[...].astype(jnp.float32)
    o_ref[0] = out.astype(o_ref.dtype)


# ----------------------------------------------------------------------------
# Wrapper: weight re-layout + pallas_call
# ----------------------------------------------------------------------------
def depthwise_conv_module_forward(x, params, *, kernel_size=7, expansion=4,
                                  time_tile=256):
    B, T, D = x.shape
    K, E = kernel_size, expansion
    assert K % 2 == 1, "same-padding (Tout == T) assumes odd kernel_size"
    PAD = K // 2
    HALO = 8                               # aligned halo region in the scratch
    assert PAD <= HALO, "kernel_size must be <= 17"

    rup = lambda a, m: -(-a // m) * m
    TT = min(rup(time_tile, 8), rup(T, 8))  # time tile, multiple of 8
    T_pad = rup(T, TT)
    nT = T_pad // TT
    TTB = TT // 8
    NB8 = T_pad // 8

    # Fold the expansion factor into lanes when D is lane-sparse (< 128):
    # MAC operands become (TT, F*D) with F*D >= 128 -> full vreg lanes.
    F = E if D < 128 else 1
    G = E // F

    xpad = x if T_pad == T else jnp.pad(x, ((0, 0), (0, T_pad - T), (0, 0)))

    # ---- re-layout PyTorch weights once (tiny, outside the kernel) ----------
    # depthwise weight (D*E, 1, K): out channel o = c*E + e reads in channel c.
    ln_g = params["ln_g"].reshape(1, D).astype(jnp.float32)
    ln_b = params["ln_b"].reshape(1, D).astype(jnp.float32)
    dww_e = jnp.transpose(params["dw_w"][:, 0, :].reshape(D, E, K), (1, 2, 0))  # (E,K,D)
    dww = dww_e.reshape(G, F, K, D).transpose(0, 2, 1, 3).reshape(G, K, F * D)
    dwb_e = params["dw_b"].reshape(D, E).T                                      # (E,D)
    dwb = dwb_e.reshape(G, F * D)
    ow = jnp.transpose(params["out_w"][:, :, 0].reshape(D, D, E), (2, 1, 0))    # (E,D,D)
    ow = ow.reshape(E * D, D).astype(jnp.bfloat16)    # bf16 MXU operand
    ob = params["out_b"].reshape(1, D).astype(jnp.float32)

    kernel = functools.partial(_fused_kernel, T, TT, D, E, K, PAD, HALO, F, G)
    out = pl.pallas_call(
        kernel,
        out_shape=jax.ShapeDtypeStruct((B, T_pad, D), jnp.float32),
        grid=(B, nT),
        in_specs=[
            # current tile
            pl.BlockSpec((1, TT, D), lambda b, t: (b, t, 0)),
            # 8-row block holding the leading halo (last rows of previous tile)
            pl.BlockSpec((1, 8, D),
                         lambda b, t: (b, jnp.maximum(t * TTB - 1, 0), 0)),
            # 8-row block holding the trailing halo (first rows of next tile)
            pl.BlockSpec((1, 8, D),
                         lambda b, t: (b, jnp.minimum((t + 1) * TTB, NB8 - 1), 0)),
            pl.BlockSpec((1, D), lambda b, t: (0, 0)),          # ln gamma
            pl.BlockSpec((1, D), lambda b, t: (0, 0)),          # ln beta
            pl.BlockSpec((G, K, F * D), lambda b, t: (0, 0, 0)),  # depthwise w
            pl.BlockSpec((G, F * D), lambda b, t: (0, 0)),         # depthwise b
            pl.BlockSpec((E * D, D), lambda b, t: (0, 0)),          # pointwise w (bf16)
            pl.BlockSpec((1, D), lambda b, t: (0, 0)),              # pointwise b
        ],
        out_specs=pl.BlockSpec((1, TT, D), lambda b, t: (b, t, 0)),
        scratch_shapes=[pltpu.VMEM((HALO + TT + HALO, F * D), jnp.float32)],
        compiler_params=pltpu.CompilerParams(
            dimension_semantics=("parallel", "parallel")),   # both axes independent
    )(xpad, xpad, xpad, ln_g, ln_b, dww, dwb, ow, ob)
    return out[:, :T, :]
    # TODO(synk): for D < 128 the final (TT, D) HBM store is still lane-sparse;
    # a lane-dense output slab (wrapper-side reshape) could further speed stores.


# ----------------------------------------------------------------------------
# Pure-JAX reference (direct transcription of the PyTorch semantics)
# ----------------------------------------------------------------------------
def ref_forward(x, p, K, E):
    B, T, D = x.shape
    pad = K // 2
    mu = x.mean(-1, keepdims=True)
    var = ((x - mu) ** 2).mean(-1, keepdims=True)
    xn = (x - mu) / jnp.sqrt(var + EPS) * p["ln_g"] + p["ln_b"]

    xp = jnp.pad(xn, ((0, 0), (pad, pad), (0, 0)))          # (B, T+2pad, D)
    W = p["dw_w"][:, 0, :]                                   # (D*E, K)
    h = jnp.zeros((B, T, D * E), jnp.float32)
    for k in range(K):
        seg = xp[:, k:k + T, :]                              # (B, T, D)
        rep = jnp.repeat(seg, E, axis=-1)                    # out ch o uses in ch o//E
        h = h + rep * W[:, k]
    h = h + p["dw_b"]
    h = jnp.where(h >= 0, h, LRELU_SLOPE * h)
    out = jnp.einsum("bto,do->btd", h, p["out_w"][:, :, 0]) + p["out_b"]
    return out


# ----------------------------------------------------------------------------
if __name__ == "__main__":
    K, E = 7, 4          # module defaults: kernel_size=7, expansion=4

    def make_params(key, D):
        k1, k2, k3, k4, k5, k6 = jax.random.split(key, 6)
        return {
            "ln_g": 1.0 + 0.1 * jax.random.normal(k1, (D,), jnp.float32),
            "ln_b": 0.1 * jax.random.normal(k2, (D,), jnp.float32),
            "dw_w": 0.2 * jax.random.normal(k3, (D * E, 1, K), jnp.float32),
            "dw_b": 0.1 * jax.random.normal(k4, (D * E,), jnp.float32),
            "out_w": 0.2 * jax.random.normal(k5, (D, D * E, 1), jnp.float32),
            "out_b": 0.1 * jax.random.normal(k6, (D,), jnp.float32),
        }

    key = jax.random.PRNGKey(0)
    # (B, T, D, time_tile): single-tile case and a multi-tile ragged-T case that
    # exercises cross-tile halos, clamped neighbour blocks and tail masking.
    cases = [(2, 16, 32, 256), (2, 200, 32, 64)]
    for i, (B, T, D, tt) in enumerate(cases):
        key, kp, kx = jax.random.split(key, 3)
        x = jax.random.normal(kx, (B, T, D), jnp.float32)
        params = make_params(kp, D)

        fwd = jax.jit(functools.partial(depthwise_conv_module_forward,
                                        kernel_size=K, expansion=E, time_tile=tt))
        y = jax.block_until_ready(fwd(x, params))

        y_ref = ref_forward(x, params, K, E)
        assert y.shape == (B, T, D), y.shape
        max_diff = float(jnp.max(jnp.abs(y - y_ref)))
        # pointwise matmul runs on the MXU in bf16 (f32 accumulation), so allow
        # bf16-level tolerance vs the f32 reference.
        assert max_diff < 2.5e-2, f"case {i}: mismatch vs reference: {max_diff}"
    print("KERNEL_OK")
</pallas_src>

<mosaic_0001>
module attributes {stable_mosaic.version = 11 : i64} {
  func.func @_fused_kernel(%arg0: i32, %arg1: i32, %arg2: memref<1x16x32xf32, #tpu.memory_space<vmem>>, %arg3: memref<1x8x32xf32, #tpu.memory_space<vmem>>, %arg4: memref<1x8x32xf32, #tpu.memory_space<vmem>>, %arg5: memref<1x32xf32, #tpu.memory_space<vmem>>, %arg6: memref<1x32xf32, #tpu.memory_space<vmem>>, %arg7: memref<1x7x128xf32, #tpu.memory_space<vmem>>, %arg8: memref<1x128xf32, #tpu.memory_space<vmem>>, %arg9: memref<128x32xbf16, #tpu.memory_space<vmem>>, %arg10: memref<1x32xf32, #tpu.memory_space<vmem>>, %arg11: memref<1x16x32xf32, #tpu.memory_space<vmem>>, %arg12: memref<32x128xf32, #tpu.memory_space<vmem>>) attributes {dimension_semantics = [#tpu.dimension_semantics<parallel>, #tpu.dimension_semantics<parallel>], iteration_bounds = array<i64: 2, 1>, scalar_prefetch = 0 : i64, scratch_operands = 1 : i64, tpu.core_type = #tpu.core_type<tc>, window_params = [{transform_indices = @transform_0, window_bounds = array<i64: 1, 16, 32>}, {transform_indices = @transform_1, window_bounds = array<i64: 1, 8, 32>}, {transform_indices = @transform_2, window_bounds = array<i64: 1, 8, 32>}, {pipeline_mode = #tpu.pipeline_mode<synchronous>, transform_indices = @transform_3, window_bounds = array<i64: 1, 32>}, {pipeline_mode = #tpu.pipeline_mode<synchronous>, transform_indices = @transform_4, window_bounds = array<i64: 1, 32>}, {pipeline_mode = #tpu.pipeline_mode<synchronous>, transform_indices = @transform_5, window_bounds = array<i64: 1, 7, 128>}, {pipeline_mode = #tpu.pipeline_mode<synchronous>, transform_indices = @transform_6, window_bounds = array<i64: 1, 128>}, {pipeline_mode = #tpu.pipeline_mode<synchronous>, transform_indices = @transform_7, window_bounds = array<i64: 128, 32>}, {pipeline_mode = #tpu.pipeline_mode<synchronous>, transform_indices = @transform_8, window_bounds = array<i64: 1, 32>}, {transform_indices = @transform_9, window_bounds = array<i64: 1, 16, 32>}]} {
    %c0 = arith.constant 0 : index
    %c0_0 = arith.constant 0 : index
    %0 = vector.load %arg5[%c0, %c0_0] : memref<1x32xf32, #tpu.memory_space<vmem>>, vector<1x32xf32>
    %c0_1 = arith.constant 0 : index
    %c0_2 = arith.constant 0 : index
    %1 = vector.load %arg6[%c0_1, %c0_2] : memref<1x32xf32, #tpu.memory_space<vmem>>, vector<1x32xf32>
    %2 = tpu.iota {dimensions = array<i32: 0>} : vector<16x1xi32>
    %c16_i32 = arith.constant 16 : i32
    %3 = arith.muli %arg1, %c16_i32 : i32
    %4 = vector.broadcast %3 : i32 to vector<16x1xi32>
    %5 = arith.addi %2, %4 : vector<16x1xi32>
    %c0_3 = arith.constant 0 : index
    %c0_4 = arith.constant 0 : index
    %c0_5 = arith.constant 0 : index
    %6 = vector.load %arg2[%c0_3, %c0_4, %c0_5] : memref<1x16x32xf32, #tpu.memory_space<vmem>>, vector<1x16x32xf32>
    %7 = vector.shape_cast %6 : vector<1x16x32xf32> to vector<16x32xf32>
    %cst = arith.constant dense<0.000000e+00> : vector<16xf32>
    %8 = vector.multi_reduction <add>, %7, %cst [1] : vector<16x32xf32> to vector<16xf32>
    %9 = vector.shape_cast %8 : vector<16xf32> to vector<16x1xf32>
    %cst_6 = arith.constant 3.200000e+01 : f32
    %10 = vector.broadcast %cst_6 : f32 to vector<16x1xf32>
    %11 = arith.divf %9, %10 : vector<16x1xf32>
    %12 = vector.broadcast %11 : vector<16x1xf32> to vector<16x32xf32>
    %13 = arith.subf %7, %12 : vector<16x32xf32>
    %14 = arith.mulf %13, %13 : vector<16x32xf32>
    %cst_7 = arith.constant dense<0.000000e+00> : vector<16xf32>
    %15 = vector.multi_reduction <add>, %14, %cst_7 [1] : vector<16x32xf32> to vector<16xf32>
    %16 = vector.shape_cast %15 : vector<16xf32> to vector<16x1xf32>
    %cst_8 = arith.constant 3.200000e+01 : f32
    %17 = vector.broadcast %cst_8 : f32 to vector<16x1xf32>
    %18 = arith.divf %16, %17 : vector<16x1xf32>
    %19 = vector.broadcast %11 : vector<16x1xf32> to vector<16x32xf32>
    %20 = arith.subf %7, %19 : vector<16x32xf32>
    %cst_9 = arith.constant 9.99999974E-6 : f32
    %21 = vector.broadcast %cst_9 : f32 to vector<16x1xf32>
    %22 = arith.addf %18, %21 : vector<16x1xf32>
    %23 = math.rsqrt %22 : vector<16x1xf32>
    %24 = vector.broadcast %23 : vector<16x1xf32> to vector<16x32xf32>
    %25 = arith.mulf %20, %24 : vector<16x32xf32>
    %26 = vector.broadcast %0 : vector<1x32xf32> to vector<16x32xf32>
    %27 = arith.mulf %25, %26 : vector<16x32xf32>
    %28 = vector.broadcast %1 : vector<1x32xf32> to vector<16x32xf32>
    %29 = arith.addf %27, %28 : vector<16x32xf32>
    %c16_i32_10 = arith.constant 16 : i32
    %30 = vector.broadcast %c16_i32_10 : i32 to vector<16x1xi32>
    %31 = arith.cmpi slt, %5, %30 : vector<16x1xi32>
    %cst_11 = arith.constant 0.000000e+00 : f32
    %32 = vector.shape_cast %31 : vector<16x1xi1> to vector<16x1xi1>
    %33 = vector.broadcast %32 : vector<16x1xi1> to vector<16x32xi1>
    %34 = vector.broadcast %cst_11 : f32 to vector<16x32xf32>
    %35 = arith.select %33, %29, %34 : vector<16x32xi1>, vector<16x32xf32>
    %36 = tpu.concatenate %35, %35, %35, %35 in 1 : vector<16x32xf32>, vector<16x32xf32>, vector<16x32xf32>, vector<16x32xf32> -> vector<16x128xf32>
    %c8 = arith.constant 8 : index
    %c0_12 = arith.constant 0 : index
    %37 = vector.load %arg12[%c8, %c0_12] : memref<32x128xf32, #tpu.memory_space<vmem>>, vector<16x128xf32>
    tpu.vector_store %arg12[%c8, %c0_12], %36 {strides = array<i32>} : memref<32x128xf32, #tpu.memory_space<vmem>>, vector<16x128xf32>,
    %38 = tpu.iota {dimensions = array<i32: 0>} : vector<3x1xi32>
    %c16_i32_13 = arith.constant 16 : i32
    %39 = arith.muli %arg1, %c16_i32_13 : i32
    %c3_i32 = arith.constant 3 : i32
    %40 = arith.subi %39, %c3_i32 : i32
    %41 = vector.broadcast %40 : i32 to vector<3x1xi32>
    %42 = arith.addi %38, %41 : vector<3x1xi32>
    %c0_14 = arith.constant 0 : index
    %c0_15 = arith.constant 0 : index
    %c0_16 = arith.constant 0 : index
    %43 = vector.load %arg3[%c0_14, %c0_15, %c0_16] : memref<1x8x32xf32, #tpu.memory_space<vmem>>, vector<1x8x32xf32>
    %44 = vector.shape_cast %43 : vector<1x8x32xf32> to vector<8x32xf32>
    %45 = vector.extract_strided_slice %44 {offsets = [5, 0], sizes = [3, 32], strides = [1, 1]} : vector<8x32xf32> to vector<3x32xf32>
    %cst_17 = arith.constant dense<0.000000e+00> : vector<3xf32>
    %46 = vector.multi_reduction <add>, %45, %cst_17 [1] : vector<3x32xf32> to vector<3xf32>
    %47 = vector.shape_cast %46 : vector<3xf32> to vector<3x1xf32>
    %cst_18 = arith.constant 3.200000e+01 : f32
    %48 = vector.broadcast %cst_18 : f32 to vector<3x1xf32>
    %49 = arith.divf %47, %48 : vector<3x1xf32>
    %50 = vector.broadcast %49 : vector<3x1xf32> to vector<3x32xf32>
    %51 = arith.subf %45, %50 : vector<3x32xf32>
    %52 = arith.mulf %51, %51 : vector<3x32xf32>
    %cst_19 = arith.constant dense<0.000000e+00> : vector<3xf32>
    %53 = vector.multi_reduction <add>, %52, %cst_19 [1] : vector<3x32xf32> to vector<3xf32>
    %54 = vector.shape_cast %53 : vector<3xf32> to vector<3x1xf32>
    %cst_20 = arith.constant 3.200000e+01 : f32
    %55 = vector.broadcast %cst_20 : f32 to vector<3x1xf32>
    %56 = arith.divf %54, %55 : vector<3x1xf32>
    %57 = vector.broadcast %49 : vector<3x1xf32> to vector<3x32xf32>
    %58 = arith.subf %45, %57 : vector<3x32xf32>
    %cst_21 = arith.constant 9.99999974E-6 : f32
    %59 = vector.broadcast %cst_21 : f32 to vector<3x1xf32>
    %60 = arith.addf %56, %59 : vector<3x1xf32>
    %61 = math.rsqrt %60 : vector<3x1xf32>
    %62 = vector.broadcast %61 : vector<3x1xf32> to vector<3x32xf32>
    %63 = arith.mulf %58, %62 : vector<3x32xf32>
    %64 = vector.broadcast %0 : vector<1x32xf32> to vector<3x32xf32>
    %65 = arith.mulf %63, %64 : vector<3x32xf32>
    %66 = vector.broadcast %1 : vector<1x32xf32> to vector<3x32xf32>
    %67 = arith.addf %65, %66 : vector<3x32xf32>
    %c0_i32 = arith.constant 0 : i32
    %68 = vector.broadcast %c0_i32 : i32 to vector<3x1xi32>
    %69 = arith.cmpi sge, %42, %68 : vector<3x1xi32>
    %c16_i32_22 = arith.constant 16 : i32
    %70 = vector.broadcast %c16_i32_22 : i32 to vector<3x1xi32>
    %71 = arith.cmpi slt, %42, %70 : vector<3x1xi32>
    %72 = arith.andi %69, %71 : vector<3x1xi1>
    %cst_23 = arith.constant 0.000000e+00 : f32
    %73 = vector.shape_cast %72 : vector<3x1xi1> to vector<3x1xi1>
    %74 = vector.broadcast %73 : vector<3x1xi1> to vector<3x32xi1>
    %75 = vector.broadcast %cst_23 : f32 to vector<3x32xf32>
    %76 = arith.select %74, %67, %75 : vector<3x32xi1>, vector<3x32xf32>
    %77 = tpu.concatenate %76, %76, %76, %76 in 1 : vector<3x32xf32>, vector<3x32xf32>, vector<3x32xf32>, vector<3x32xf32> -> vector<3x128xf32>
    %c5 = arith.constant 5 : index
    %c0_24 = arith.constant 0 : index
    %78 = vector.load %arg12[%c5, %c0_24] : memref<32x128xf32, #tpu.memory_space<vmem>>, vector<3x128xf32>
    tpu.vector_store %arg12[%c5, %c0_24], %77 {strides = array<i32>} : memref<32x128xf32, #tpu.memory_space<vmem>>, vector<3x128xf32>,
    %79 = tpu.iota {dimensions = array<i32: 0>} : vector<3x1xi32>
    %c1_i32 = arith.constant 1 : i32
    %80 = arith.addi %arg1, %c1_i32 : i32
    %c16_i32_25 = arith.constant 16 : i32
    %81 = arith.muli %80, %c16_i32_25 : i32
    %82 = vector.broadcast %81 : i32 to vector<3x1xi32>
    %83 = arith.addi %79, %82 : vector<3x1xi32>
    %c0_26 = arith.constant 0 : index
    %c0_27 = arith.constant 0 : index
    %c0_28 = arith.constant 0 : index
    %84 = vector.load %arg4[%c0_26, %c0_27, %c0_28] : memref<1x8x32xf32, #tpu.memory_space<vmem>>, vector<1x8x32xf32>
    %85 = vector.shape_cast %84 : vector<1x8x32xf32> to vector<8x32xf32>
    %86 = vector.extract_strided_slice %85 {offsets = [0, 0], sizes = [3, 32], strides = [1, 1]} : vector<8x32xf32> to vector<3x32xf32>
    %cst_29 = arith.constant dense<0.000000e+00> : vector<3xf32>
    %87 = vector.multi_reduction <add>, %86, %cst_29 [1] : vector<3x32xf32> to vector<3xf32>
    %88 = vector.shape_cast %87 : vector<3xf32> to vector<3x1xf32>
    %cst_30 = arith.constant 3.200000e+01 : f32
    %89 = vector.broadcast %cst_30 : f32 to vector<3x1xf32>
    %90 = arith.divf %88, %89 : vector<3x1xf32>
    %91 = vector.broadcast %90 : vector<3x1xf32> to vector<3x32xf32>
    %92 = arith.subf %86, %91 : vector<3x32xf32>
    %93 = arith.mulf %92, %92 : vector<3x32xf32>
    %cst_31 = arith.constant dense<0.000000e+00> : vector<3xf32>
    %94 = vector.multi_reduction <add>, %93, %cst_31 [1] : vector<3x32xf32> to vector<3xf32>
    %95 = vector.shape_cast %94 : vector<3xf32> to vector<3x1xf32>
    %cst_32 = arith.constant 3.200000e+01 : f32
    %96 = vector.broadcast %cst_32 : f32 to vector<3x1xf32>
    %97 = arith.divf %95, %96 : vector<3x1xf32>
    %98 = vector.broadcast %90 : vector<3x1xf32> to vector<3x32xf32>
    %99 = arith.subf %86, %98 : vector<3x32xf32>
    %cst_33 = arith.constant 9.99999974E-6 : f32
    %100 = vector.broadcast %cst_33 : f32 to vector<3x1xf32>
    %101 = arith.addf %97, %100 : vector<3x1xf32>
    %102 = math.rsqrt %101 : vector<3x1xf32>
    %103 = vector.broadcast %102 : vector<3x1xf32> to vector<3x32xf32>
    %104 = arith.mulf %99, %103 : vector<3x32xf32>
    %105 = vector.broadcast %0 : vector<1x32xf32> to vector<3x32xf32>
    %106 = arith.mulf %104, %105 : vector<3x32xf32>
    %107 = vector.broadcast %1 : vector<1x32xf32> to vector<3x32xf32>
    %108 = arith.addf %106, %107 : vector<3x32xf32>
    %c16_i32_34 = arith.constant 16 : i32
    %109 = vector.broadcast %c16_i32_34 : i32 to vector<3x1xi32>
    %110 = arith.cmpi slt, %83, %109 : vector<3x1xi32>
    %cst_35 = arith.constant 0.000000e+00 : f32
    %111 = vector.shape_cast %110 : vector<3x1xi1> to vector<3x1xi1>
    %112 = vector.broadcast %111 : vector<3x1xi1> to vector<3x32xi1>
    %113 = vector.broadcast %cst_35 : f32 to vector<3x32xf32>
    %114 = arith.select %112, %108, %113 : vector<3x32xi1>, vector<3x32xf32>
    %115 = tpu.concatenate %114, %114, %114, %114 in 1 : vector<3x32xf32>, vector<3x32xf32>, vector<3x32xf32>, vector<3x32xf32> -> vector<3x128xf32>
    %c24 = arith.constant 24 : index
    %c0_36 = arith.constant 0 : index
    %116 = vector.load %arg12[%c24, %c0_36] : memref<32x128xf32, #tpu.memory_space<vmem>>, vector<3x128xf32>
    tpu.vector_store %arg12[%c24, %c0_36], %115 {strides = array<i32>} : memref<32x128xf32, #tpu.memory_space<vmem>>, vector<3x128xf32>,
    %c0_37 = arith.constant 0 : index
    %c0_38 = arith.constant 0 : index
    %c0_39 = arith.constant 0 : index
    %117 = vector.load %arg7[%c0_37, %c0_38, %c0_39] : memref<1x7x128xf32, #tpu.memory_space<vmem>>, vector<1x7x128xf32>
    %c0_40 = arith.constant 0 : index
    %c0_41 = arith.constant 0 : index
    %118 = vector.load %arg8[%c0_40, %c0_41] : memref<1x128xf32, #tpu.memory_space<vmem>>, vector<1x128xf32>
    %cst_42 = arith.constant 0.000000e+00 : f32
    %119 = vector.broadcast %cst_42 : f32 to vector<16x128xf32>
    %c5_43 = arith.constant 5 : index
    %c0_44 = arith.constant 0 : index
    %120 = vector.load %arg12[%c5_43, %c0_44] : memref<32x128xf32, #tpu.memory_space<vmem>>, vector<16x128xf32>
    %121 = vector.extract_strided_slice %117 {offsets = [0, 0, 0], sizes = [1, 1, 128], strides = [1, 1, 1]} : vector<1x7x128xf32> to vector<1x1x128xf32>
    %122 = vector.shape_cast %121 : vector<1x1x128xf32> to vector<128xf32>
    %123 = vector.shape_cast %122 : vector<128xf32> to vector<1x128xf32>
    %124 = vector.broadcast %123 : vector<1x128xf32> to vector<16x128xf32>
    %125 = arith.mulf %120, %124 : vector<16x128xf32>
    %126 = arith.addf %119, %125 : vector<16x128xf32>
    %c6 = arith.constant 6 : index
    %c0_45 = arith.constant 0 : index
    %127 = vector.load %arg12[%c6, %c0_45] : memref<32x128xf32, #tpu.memory_space<vmem>>, vector<16x128xf32>
    %128 = vector.extract_strided_slice %117 {offsets = [0, 1, 0], sizes = [1, 1, 128], strides = [1, 1, 1]} : vector<1x7x128xf32> to vector<1x1x128xf32>
    %129 = vector.shape_cast %128 : vector<1x1x128xf32> to vector<128xf32>
    %130 = vector.shape_cast %129 : vector<128xf32> to vector<1x128xf32>
    %131 = vector.broadcast %130 : vector<1x128xf32> to vector<16x128xf32>
    %132 = arith.mulf %127, %131 : vector<16x128xf32>
    %133 = arith.addf %126, %132 : vector<16x128xf32>
    %c7 = arith.constant 7 : index
    %c0_46 = arith.constant 0 : index
    %134 = vector.load %arg12[%c7, %c0_46] : memref<32x128xf32, #tpu.memory_space<vmem>>, vector<16x128xf32>
    %135 = vector.extract_strided_slice %117 {offsets = [0, 2, 0], sizes = [1, 1, 128], strides = [1, 1, 1]} : vector<1x7x128xf32> to vector<1x1x128xf32>
    %136 = vector.shape_cast %135 : vector<1x1x128xf32> to vector<128xf32>
    %137 = vector.shape_cast %136 : vector<128xf32> to vector<1x128xf32>
    %138 = vector.broadcast %137 : vector<1x128xf32> to vector<16x128xf32>
    %139 = arith.mulf %134, %138 : vector<16x128xf32>
    %140 = arith.addf %133, %139 : vector<16x128xf32>
    %c8_47 = arith.constant 8 : index
    %c0_48 = arith.constant 0 : index
    %141 = vector.load %arg12[%c8_47, %c0_48] : memref<32x128xf32, #tpu.memory_space<vmem>>, vector<16x128xf32>
    %142 = vector.extract_strided_slice %117 {offsets = [0, 3, 0], sizes = [1, 1, 128], strides = [1, 1, 1]} : vector<1x7x128xf32> to vector<1x1x128xf32>
    %143 = vector.shape_cast %142 : vector<1x1x128xf32> to vector<128xf32>
    %144 = vector.shape_cast %143 : vector<128xf32> to vector<1x128xf32>
    %145 = vector.broadcast %144 : vector<1x128xf32> to vector<16x128xf32>
    %146 = arith.mulf %141, %145 : vector<16x128xf32>
    %147 = arith.addf %140, %146 : vector<16x128xf32>
    %c9 = arith.constant 9 : index
    %c0_49 = arith.constant 0 : index
    %148 = vector.load %arg12[%c9, %c0_49] : memref<32x128xf32, #tpu.memory_space<vmem>>, vector<16x128xf32>
    %149 = vector.extract_strided_slice %117 {offsets = [0, 4, 0], sizes = [1, 1, 128], strides = [1, 1, 1]} : vector<1x7x128xf32> to vector<1x1x128xf32>
    %150 = vector.shape_cast %149 : vector<1x1x128xf32> to vector<128xf32>
    %151 = vector.shape_cast %150 : vector<128xf32> to vector<1x128xf32>
    %152 = vector.broadcast %151 : vector<1x128xf32> to vector<16x128xf32>
    %153 = arith.mulf %148, %152 : vector<16x128xf32>
    %154 = arith.addf %147, %153 : vector<16x128xf32>
    %c10 = arith.constant 10 : index
    %c0_50 = arith.constant 0 : index
    %155 = vector.load %arg12[%c10, %c0_50] : memref<32x128xf32, #tpu.memory_space<vmem>>, vector<16x128xf32>
    %156 = vector.extract_strided_slice %117 {offsets = [0, 5, 0], sizes = [1, 1, 128], strides = [1, 1, 1]} : vector<1x7x128xf32> to vector<1x1x128xf32>
    %157 = vector.shape_cast %156 : vector<1x1x128xf32> to vector<128xf32>
    %158 = vector.shape_cast %157 : vector<128xf32> to vector<1x128xf32>
    %159 = vector.broadcast %158 : vector<1x128xf32> to vector<16x128xf32>
    %160 = arith.mulf %155, %159 : vector<16x128xf32>
    %161 = arith.addf %154, %160 : vector<16x128xf32>
    %c11 = arith.constant 11 : index
    %c0_51 = arith.constant 0 : index
    %162 = vector.load %arg12[%c11, %c0_51] : memref<32x128xf32, #tpu.memory_space<vmem>>, vector<16x128xf32>
    %163 = vector.extract_strided_slice %117 {offsets = [0, 6, 0], sizes = [1, 1, 128], strides = [1, 1, 1]} : vector<1x7x128xf32> to vector<1x1x128xf32>
    %164 = vector.shape_cast %163 : vector<1x1x128xf32> to vector<128xf32>
    %165 = vector.shape_cast %164 : vector<128xf32> to vector<1x128xf32>
    %166 = vector.broadcast %165 : vector<1x128xf32> to vector<16x128xf32>
    %167 = arith.mulf %162, %166 : vector<16x128xf32>
    %168 = arith.addf %161, %167 : vector<16x128xf32>
    %169 = vector.shape_cast %118 : vector<1x128xf32> to vector<128xf32>
    %170 = vector.shape_cast %169 : vector<128xf32> to vector<1x128xf32>
    %171 = vector.broadcast %170 : vector<1x128xf32> to vector<16x128xf32>
    %172 = arith.addf %168, %171 : vector<16x128xf32>
    %cst_52 = arith.constant 0.000000e+00 : f32
    %173 = vector.broadcast %cst_52 : f32 to vector<16x128xf32>
    %174 = arith.cmpf oge, %172, %173 : vector<16x128xf32>
    %cst_53 = arith.constant 3.000000e-01 : f32
    %175 = vector.broadcast %cst_53 : f32 to vector<16x128xf32>
    %176 = arith.mulf %172, %175 : vector<16x128xf32>
    %177 = arith.select %174, %172, %176 : vector<16x128xi1>, vector<16x128xf32>
    %178 = arith.truncf %177 : vector<16x128xf32> to vector<16x128xbf16>
    %c0_54 = arith.constant 0 : index
    %c0_55 = arith.constant 0 : index
    %179 = vector.load %arg9[%c0_54, %c0_55] : memref<128x32xbf16, #tpu.memory_space<vmem>>, vector<128x32xbf16>
    %cst_56 = arith.constant dense<0.000000e+00> : vector<16x32xf32>
    %180 = tpu.matmul %178, %179, %cst_56 {dimension_numbers = #tpu.dot_dimension_numbers<[1], [0], [0], [1], [0, 0, 1, 1], [], []>} : vector<16x128xbf16>, vector<128x32xbf16>, vector<16x32xf32> -> vector<16x32xf32>
    %c0_57 = arith.constant 0 : index
    %c0_58 = arith.constant 0 : index
    %181 = vector.load %arg10[%c0_57, %c0_58] : memref<1x32xf32, #tpu.memory_space<vmem>>, vector<1x32xf32>
    %182 = vector.broadcast %181 : vector<1x32xf32> to vector<16x32xf32>
    %183 = arith.addf %180, %182 : vector<16x32xf32>
    %c0_59 = arith.constant 0 : index
    %c0_60 = arith.constant 0 : index
    %c0_61 = arith.constant 0 : index
    %184 = vector.load %arg11[%c0_59, %c0_60, %c0_61] : memref<1x16x32xf32, #tpu.memory_space<vmem>>, vector<1x16x32xf32>
    %185 = vector.shape_cast %184 : vector<1x16x32xf32> to vector<16x32xf32>
    %186 = vector.shape_cast %183 : vector<16x32xf32> to vector<1x16x32xf32>
    tpu.vector_store %arg11[%c0_59, %c0_60, %c0_61], %186 {strides = array<i32>} : memref<1x16x32xf32, #tpu.memory_space<vmem>>, vector<1x16x32xf32>,
    return
  }
  func.func @transform_0(%arg0: i32, %arg1: i32) -> (i32, i32, i32) {
    %c0_i32 = arith.constant 0 : i32
    %c0_i32_0 = arith.constant 0 : i32
    return %arg0, %arg1, %c0_i32 : i32, i32, i32
  }
  func.func @transform_1(%arg0: i32, %arg1: i32) -> (i32, i32, i32) {
    %c2_i32 = arith.constant 2 : i32
    %0 = arith.muli %arg1, %c2_i32 : i32
    %c1_i32 = arith.constant 1 : i32
    %1 = arith.subi %0, %c1_i32 : i32
    %c0_i32 = arith.constant 0 : i32
    %2 = arith.maxsi %1, %c0_i32 : i32
    %c0_i32_0 = arith.constant 0 : i32
    %c0_i32_1 = arith.constant 0 : i32
    return %arg0, %2, %c0_i32_0 : i32, i32, i32
  }
  func.func @transform_2(%arg0: i32, %arg1: i32) -> (i32, i32, i32) {
    %c1_i32 = arith.constant 1 : i32
    %0 = arith.addi %arg1, %c1_i32 : i32
    %c2_i32 = arith.constant 2 : i32
    %1 = arith.muli %0, %c2_i32 : i32
    %c1_i32_0 = arith.constant 1 : i32
    %2 = arith.minsi %1, %c1_i32_0 : i32
    %c0_i32 = arith.constant 0 : i32
    %c0_i32_1 = arith.constant 0 : i32
    return %arg0, %2, %c0_i32 : i32, i32, i32
  }
  func.func @transform_3(%arg0: i32, %arg1: i32) -> (i32, i32) {
    %c0_i32 = arith.constant 0 : i32
    %c0_i32_0 = arith.constant 0 : i32
    %c0_i32_1 = arith.constant 0 : i32
    return %c0_i32, %c0_i32_0 : i32, i32
  }
  func.func @transform_4(%arg0: i32, %arg1: i32) -> (i32, i32) {
    %c0_i32 = arith.constant 0 : i32
    %c0_i32_0 = arith.constant 0 : i32
    %c0_i32_1 = arith.constant 0 : i32
    return %c0_i32, %c0_i32_0 : i32, i32
  }
  func.func @transform_5(%arg0: i32, %arg1: i32) -> (i32, i32, i32) {
    %c0_i32 = arith.constant 0 : i32
    %c0_i32_0 = arith.constant 0 : i32
    %c0_i32_1 = arith.constant 0 : i32
    %c0_i32_2 = arith.constant 0 : i32
    return %c0_i32, %c0_i32_0, %c0_i32_1 : i32, i32, i32
  }
  func.func @transform_6(%arg0: i32, %arg1: i32) -> (i32, i32) {
    %c0_i32 = arith.constant 0 : i32
    %c0_i32_0 = arith.constant 0 : i32
    %c0_i32_1 = arith.constant 0 : i32
    return %c0_i32, %c0_i32_0 : i32, i32
  }
  func.func @transform_7(%arg0: i32, %arg1: i32) -> (i32, i32) {
    %c0_i32 = arith.constant 0 : i32
    %c0_i32_0 = arith.constant 0 : i32
    %c0_i32_1 = arith.constant 0 : i32
    return %c0_i32, %c0_i32_0 : i32, i32
  }
  func.func @transform_8(%arg0: i32, %arg1: i32) -> (i32, i32) {
    %c0_i32 = arith.constant 0 : i32
    %c0_i32_0 = arith.constant 0 : i32
    %c0_i32_1 = arith.constant 0 : i32
    return %c0_i32, %c0_i32_0 : i32, i32
  }
  func.func @transform_9(%arg0: i32, %arg1: i32) -> (i32, i32, i32) {
    %c0_i32 = arith.constant 0 : i32
    %c0_i32_0 = arith.constant 0 : i32
    return %arg0, %arg1, %c0_i32 : i32, i32, i32
  }
}

</mosaic_0001>

<llo_original>
// kernel: squeeze.2
$region0: #{squeeze.2}
  %s0 = inlined_call_operand.vmem [shape: f32[128,7], index: 0, kind: input, shape index: {}]
  %s1 = inlined_call_operand.vmem [shape: f32[32,4,7], index: 1, kind: output, shape index: {}]
  %v2 = vld [vmem:[%s0] sm:$0x7f]
  %vm3 = vcmask 31744
  %4 = vst.msk [vmem:[%s1] sm:$0x1] %vm3, %v2
  %s5 = scalar_lea.vmem %s1, 31
  %6 = vst.msk [vmem:[%s5] sm:$0x2] %vm3, %v2
  %s7 = scalar_lea.vmem %s1, 62
  %8 = vst.msk [vmem:[%s7] sm:$0x4] %vm3, %v2
  %s9 = scalar_lea.vmem %s1, 93
  %10 = vst.msk [vmem:[%s9] sm:$0x8] %vm3, %v2
  %s11 = scalar_lea.vmem %s1, 124
  %12 = vst.msk [vmem:[%s11] sm:$0x10] %vm3, %v2
  %s13 = scalar_lea.vmem %s1, 155
  %14 = vst.msk [vmem:[%s13] sm:$0x20] %vm3, %v2
  %s15 = scalar_lea.vmem %s1, 186
  %16 = vst.msk [vmem:[%s15] sm:$0x40] %vm3, %v2
  %v17 = vld [vmem:[%s0] sm:$0x7f]
  %18 = vrot.lane.b32.xlu0 %v17, 124
  %v19 = vpop.permute.xlu0 %18
  %vm20 = vcmask 31744
  %s21 = scalar_lea.vmem %s1, 1
  %22 = vst.msk [vmem:[%s21] sm:$0x1] %vm20, %v19
  %s23 = scalar_lea.vmem %s1, 32
  %24 = vst.msk [vmem:[%s23] sm:$0x2] %vm20, %v19
  %s25 = scalar_lea.vmem %s1, 63
  %26 = vst.msk [vmem:[%s25] sm:$0x4] %vm20, %v19
  %s27 = scalar_lea.vmem %s1, 94
  %28 = vst.msk [vmem:[%s27] sm:$0x8] %vm20, %v19
  %s29 = scalar_lea.vmem %s1, 125
  %30 = vst.msk [vmem:[%s29] sm:$0x10] %vm20, %v19
  %s31 = scalar_lea.vmem %s1, 156
  %32 = vst.msk [vmem:[%s31] sm:$0x20] %vm20, %v19
  %s33 = scalar_lea.vmem %s1, 187
  %34 = vst.msk [vmem:[%s33] sm:$0x40] %vm20, %v19
  %v35 = vld [vmem:[%s0] sm:$0x7f]
  %36 = vrot.lane.b32.xlu0 %v35, 120
  %v37 = vpop.permute.xlu0 %36
  %vm38 = vcmask 31744
  %s39 = scalar_lea.vmem %s1, 2
  %40 = vst.msk [vmem:[%s39] sm:$0x1] %vm38, %v37
  %s41 = scalar_lea.vmem %s1, 33
  %42 = vst.msk [vmem:[%s41] sm:$0x2] %vm38, %v37
  %s43 = scalar_lea.vmem %s1, 64
  %44 = vst.msk [vmem:[%s43] sm:$0x4] %vm38, %v37
  %s45 = scalar_lea.vmem %s1, 95
  %46 = vst.msk [vmem:[%s45] sm:$0x8] %vm38, %v37
  %s47 = scalar_lea.vmem %s1, 126
  %48 = vst.msk [vmem:[%s47] sm:$0x10] %vm38, %v37
  %s49 = scalar_lea.vmem %s1, 157
  %50 = vst.msk [vmem:[%s49] sm:$0x20] %vm38, %v37
  %s51 = scalar_lea.vmem %s1, 188
  %52 = vst.msk [vmem:[%s51] sm:$0x40] %vm38, %v37
  %v53 = vld [vmem:[%s0] sm:$0x7f]
  %54 = vrot.lane.b32.xlu0 %v53, 116
  %v55 = vpop.permute.xlu0 %54
  %vm56 = vcmask 31744
  %s57 = scalar_lea.vmem %s1, 3
  %58 = vst.msk [vmem:[%s57] sm:$0x1] %vm56, %v55
  %s59 = scalar_lea.vmem %s1, 34
  %60 = vst.msk [vmem:[%s59] sm:$0x2] %vm56, %v55
  %s61 = scalar_lea.vmem %s1, 65
  %62 = vst.msk [vmem:[%s61] sm:$0x4] %vm56, %v55
  %s63 = scalar_lea.vmem %s1, 96
  %64 = vst.msk [vmem:[%s63] sm:$0x8] %vm56, %v55
  %s65 = scalar_lea.vmem %s1, 127
  %66 = vst.msk [vmem:[%s65] sm:$0x10] %vm56, %v55
  %s67 = scalar_lea.vmem %s1, 158
  %68 = vst.msk [vmem:[%s67] sm:$0x20] %vm56, %v55
  %s69 = scalar_lea.vmem %s1, 189
  %70 = vst.msk [vmem:[%s69] sm:$0x40] %vm56, %v55
  %v71 = vld [vmem:[%s0] sm:$0x7f]
  %72 = vrot.lane.b32.xlu0 %v71, 112
  %v73 = vpop.permute.xlu0 %72
  %vm74 = vcmask 31744
  %s75 = scalar_lea.vmem %s1, 4
  %76 = vst.msk [vmem:[%s75] sm:$0x1] %vm74, %v73
  %s77 = scalar_lea.vmem %s1, 35
  %78 = vst.msk [vmem:[%s77] sm:$0x2] %vm74, %v73
  %s79 = scalar_lea.vmem %s1, 66
  %80 = vst.msk [vmem:[%s79] sm:$0x4] %vm74, %v73
  %s81 = scalar_lea.vmem %s1, 97
  %82 = vst.msk [vmem:[%s81] sm:$0x8] %vm74, %v73
  %s83 = scalar_lea.vmem %s1, 128
  %84 = vst.msk [vmem:[%s83] sm:$0x10] %vm74, %v73
  %s85 = scalar_lea.vmem %s1, 159
  %86 = vst.msk [vmem:[%s85] sm:$0x20] %vm74, %v73
  %s87 = scalar_lea.vmem %s1, 190
  %88 = vst.msk [vmem:[%s87] sm:$0x40] %vm74, %v73
  %v89 = vld [vmem:[%s0] sm:$0x7f]
  %90 = vrot.lane.b32.xlu0 %v89, 108
  %v91 = vpop.permute.xlu0 %90
  %vm92 = vcmask 31744
  %s93 = scalar_lea.vmem %s1, 5
  %94 = vst.msk [vmem:[%s93] sm:$0x1] %vm92, %v91
  %s95 = scalar_lea.vmem %s1, 36
  %96 = vst.msk [vmem:[%s95] sm:$0x2] %vm92, %v91
  %s97 = scalar_lea.vmem %s1, 67
  %98 = vst.msk [vmem:[%s97] sm:$0x4] %vm92, %v91
  %s99 = scalar_lea.vmem %s1, 98
  %100 = vst.msk [vmem:[%s99] sm:$0x8] %vm92, %v91
  %s101 = scalar_lea.vmem %s1, 129
  %102 = vst.msk [vmem:[%s101] sm:$0x10] %vm92, %v91
  %s103 = scalar_lea.vmem %s1, 160
  %104 = vst.msk [vmem:[%s103] sm:$0x20] %vm92, %v91
  %s105 = scalar_lea.vmem %s1, 191
  %106 = vst.msk [vmem:[%s105] sm:$0x40] %vm92, %v91
  %v107 = vld [vmem:[%s0] sm:$0x7f]
  %108 = vrot.lane.b32.xlu0 %v107, 104
  %v109 = vpop.permute.xlu0 %108
  %vm110 = vcmask 31744
  %s111 = scalar_lea.vmem %s1, 6
  %112 = vst.msk [vmem:[%s111] sm:$0x1] %vm110, %v109
  %s113 = scalar_lea.vmem %s1, 37
  %114 = vst.msk [vmem:[%s113] sm:$0x2] %vm110, %v109
  %s115 = scalar_lea.vmem %s1, 68
  %116 = vst.msk [vmem:[%s115] sm:$0x4] %vm110, %v109
  %s117 = scalar_lea.vmem %s1, 99
  %118 = vst.msk [vmem:[%s117] sm:$0x8] %vm110, %v109
  %s119 = scalar_lea.vmem %s1, 130
  %120 = vst.msk [vmem:[%s119] sm:$0x10] %vm110, %v109
  %s121 = scalar_lea.vmem %s1, 161
  %122 = vst.msk [vmem:[%s121] sm:$0x20] %vm110, %v109
  %s123 = scalar_lea.vmem %s1, 192
  %124 = vst.msk [vmem:[%s123] sm:$0x40] %vm110, %v109
  %v125 = vld [vmem:[%s0] sm:$0x7f]
  %126 = vrot.lane.b32.xlu0 %v125, 100
  %v127 = vpop.permute.xlu0 %126
  %vm128 = vcmask 31744
  %s129 = scalar_lea.vmem %s1, 7
  %130 = vst.msk [vmem:[%s129] sm:$0x1] %vm128, %v127
  %s131 = scalar_lea.vmem %s1, 38
  %132 = vst.msk [vmem:[%s131] sm:$0x2] %vm128, %v127
  %s133 = scalar_lea.vmem %s1, 69
  %134 = vst.msk [vmem:[%s133] sm:$0x4] %vm128, %v127
  %s135 = scalar_lea.vmem %s1, 100
  %136 = vst.msk [vmem:[%s135] sm:$0x8] %vm128, %v127
  %s137 = scalar_lea.vmem %s1, 131
  %138 = vst.msk [vmem:[%s137] sm:$0x10] %vm128, %v127
  %s139 = scalar_lea.vmem %s1, 162
  %140 = vst.msk [vmem:[%s139] sm:$0x20] %vm128, %v127
  %s141 = scalar_lea.vmem %s1, 193
  %142 = vst.msk [vmem:[%s141] sm:$0x40] %vm128, %v127
  %v143 = vld [vmem:[%s0] sm:$0x7f]
  %144 = vrot.lane.b32.xlu0 %v143, 96
  %v145 = vpop.permute.xlu0 %144
  %vm146 = vcmask 31744
  %s147 = scalar_lea.vmem %s1, 8
  %148 = vst.msk [vmem:[%s147] sm:$0x1] %vm146, %v145
  %s149 = scalar_lea.vmem %s1, 39
  %150 = vst.msk [vmem:[%s149] sm:$0x2] %vm146, %v145
  %s151 = scalar_lea.vmem %s1, 70
  %152 = vst.msk [vmem:[%s151] sm:$0x4] %vm146, %v145
  %s153 = scalar_lea.vmem %s1, 101
  %154 = vst.msk [vmem:[%s153] sm:$0x8] %vm146, %v145
  %s155 = scalar_lea.vmem %s1, 132
  %156 = vst.msk [vmem:[%s155] sm:$0x10] %vm146, %v145
  %s157 = scalar_lea.vmem %s1, 163
  %158 = vst.msk [vmem:[%s157] sm:$0x20] %vm146, %v145
  %s159 = scalar_lea.vmem %s1, 194
  %160 = vst.msk [vmem:[%s159] sm:$0x40] %vm146, %v145
  %v161 = vld [vmem:[%s0] sm:$0x7f]
  %162 = vrot.lane.b32.xlu0 %v161, 92
  %v163 = vpop.permute.xlu0 %162
  %vm164 = vcmask 31744
  %s165 = scalar_lea.vmem %s1, 9
  %166 = vst.msk [vmem:[%s165] sm:$0x1] %vm164, %v163
  %s167 = scalar_lea.vmem %s1, 40
  %168 = vst.msk [vmem:[%s167] sm:$0x2] %vm164, %v163
  %s169 = scalar_lea.vmem %s1, 71
  %170 = vst.msk [vmem:[%s169] sm:$0x4] %vm164, %v163
  %s171 = scalar_lea.vmem %s1, 102
  %172 = vst.msk [vmem:[%s171] sm:$0x8] %vm164, %v163
  %s173 = scalar_lea.vmem %s1, 133
  %174 = vst.msk [vmem:[%s173] sm:$0x10] %vm164, %v163
  %s175 = scalar_lea.vmem %s1, 164
  %176 = vst.msk [vmem:[%s175] sm:$0x20] %vm164, %v163
  %s177 = scalar_lea.vmem %s1, 195
  %178 = vst.msk [vmem:[%s177] sm:$0x40] %vm164, %v163
  %v179 = vld [vmem:[%s0] sm:$0x7f]
  %180 = vrot.lane.b32.xlu0 %v179, 88
  %v181 = vpop.permute.xlu0 %180
  %vm182 = vcmask 31744
  %s183 = scalar_lea.vmem %s1, 10
  %184 = vst.msk [vmem:[%s183] sm:$0x1] %vm182, %v181
  %s185 = scalar_lea.vmem %s1, 41
  %186 = vst.msk [vmem:[%s185] sm:$0x2] %vm182, %v181
  %s187 = scalar_lea.vmem %s1, 72
  %188 = vst.msk [vmem:[%s187] sm:$0x4] %vm182, %v181
  %s189 = scalar_lea.vmem %s1, 103
  %190 = vst.msk [vmem:[%s189] sm:$0x8] %vm182, %v181
  %s191 = scalar_lea.vmem %s1, 134
  %192 = vst.msk [vmem:[%s191] sm:$0x10] %vm182, %v181
  %s193 = scalar_lea.vmem %s1, 165
  %194 = vst.msk [vmem:[%s193] sm:$0x20] %vm182, %v181
  %s195 = scalar_lea.vmem %s1, 196
  %196 = vst.msk [vmem:[%s195] sm:$0x40] %vm182, %v181
  %v197 = vld [vmem:[%s0] sm:$0x7f]
  %198 = vrot.lane.b32.xlu0 %v197, 84
  %v199 = vpop.permute.xlu0 %198
  %vm200 = vcmask 31744
  %s201 = scalar_lea.vmem %s1, 11
  %202 = vst.msk [vmem:[%s201] sm:$0x1] %vm200, %v199
  %s203 = scalar_lea.vmem %s1, 42
  %204 = vst.msk [vmem:[%s203] sm:$0x2] %vm200, %v199
  %s205 = scalar_lea.vmem %s1, 73
  %206 = vst.msk [vmem:[%s205] sm:$0x4] %vm200, %v199
  %s207 = scalar_lea.vmem %s1, 104
  %208 = vst.msk [vmem:[%s207] sm:$0x8] %vm200, %v199
  %s209 = scalar_lea.vmem %s1, 135
  %210 = vst.msk [vmem:[%s209] sm:$0x10] %vm200, %v199
  %s211 = scalar_lea.vmem %s1, 166
  %212 = vst.msk [vmem:[%s211] sm:$0x20] %vm200, %v199
  %s213 = scalar_lea.vmem %s1, 197
  %214 = vst.msk [vmem:[%s213] sm:$0x40] %vm200, %v199
  %v215 = vld [vmem:[%s0] sm:$0x7f]
  %216 = vrot.lane.b32.xlu0 %v215, 80
  %v217 = vpop.permute.xlu0 %216
  %vm218 = vcmask 31744
  %s219 = scalar_lea.vmem %s1, 12
  %220 = vst.msk [vmem:[%s219] sm:$0x1] %vm218, %v217
  %s221 = scalar_lea.vmem %s1, 43
  %222 = vst.msk [vmem:[%s221] sm:$0x2] %vm218, %v217
  %s223 = scalar_lea.vmem %s1, 74
  %224 = vst.msk [vmem:[%s223] sm:$0x4] %vm218, %v217
  %s225 = scalar_lea.vmem %s1, 105
  %226 = vst.msk [vmem:[%s225] sm:$0x8] %vm218, %v217
  %s227 = scalar_lea.vmem %s1, 136
  %228 = vst.msk [vmem:[%s227] sm:$0x10] %vm218, %v217
  %s229 = scalar_lea.vmem %s1, 167
  %230 = vst.msk [vmem:[%s229] sm:$0x20] %vm218, %v217
  %s231 = scalar_lea.vmem %s1, 198
  %232 = vst.msk [vmem:[%s231] sm:$0x40] %vm218, %v217
  %v233 = vld [vmem:[%s0] sm:$0x7f]
  %234 = vrot.lane.b32.xlu0 %v233, 76
  %v235 = vpop.permute.xlu0 %234
  %vm236 = vcmask 31744
  %s237 = scalar_lea.vmem %s1, 13
  %238 = vst.msk [vmem:[%s237] sm:$0x1] %vm236, %v235
  %s239 = scalar_lea.vmem %s1, 44
  %240 = vst.msk [vmem:[%s239] sm:$0x2] %vm236, %v235
  %s241 = scalar_lea.vmem %s1, 75
  %242 = vst.msk [vmem:[%s241] sm:$0x4] %vm236, %v235
  %s243 = scalar_lea.vmem %s1, 106
  %244 = vst.msk [vmem:[%s243] sm:$0x8] %vm236, %v235
  %s245 = scalar_lea.vmem %s1, 137
  %246 = vst.msk [vmem:[%s245] sm:$0x10] %vm236, %v235
  %s247 = scalar_lea.vmem %s1, 168
  %248 = vst.msk [vmem:[%s247] sm:$0x20] %vm236, %v235
  %s249 = scalar_lea.vmem %s1, 199
  %250 = vst.msk [vmem:[%s249] sm:$0x40] %vm236, %v235
  %v251 = vld [vmem:[%s0] sm:$0x7f]
  %252 = vrot.lane.b32.xlu0 %v251, 72
  %v253 = vpop.permute.xlu0 %252
  %vm254 = vcmask 31744
  %s255 = scalar_lea.vmem %s1, 14
  %256 = vst.msk [vmem:[%s255] sm:$0x1] %vm254, %v253
  %s257 = scalar_lea.vmem %s1, 45
  %258 = vst.msk [vmem:[%s257] sm:$0x2] %vm254, %v253
  %s259 = scalar_lea.vmem %s1, 76
  %260 = vst.msk [vmem:[%s259] sm:$0x4] %vm254, %v253
  %s261 = scalar_lea.vmem %s1, 107
  %262 = vst.msk [vmem:[%s261] sm:$0x8] %vm254, %v253
  %s263 = scalar_lea.vmem %s1, 138
  %264 = vst.msk [vmem:[%s263] sm:$0x10] %vm254, %v253
  %s265 = scalar_lea.vmem %s1, 169
  %266 = vst.msk [vmem:[%s265] sm:$0x20] %vm254, %v253
  %s267 = scalar_lea.vmem %s1, 200
  %268 = vst.msk [vmem:[%s267] sm:$0x40] %vm254, %v253
  %v269 = vld [vmem:[%s0] sm:$0x7f]
  %270 = vrot.lane.b32.xlu0 %v269, 68
  %v271 = vpop.permute.xlu0 %270
  %vm272 = vcmask 31744
  %s273 = scalar_lea.vmem %s1, 15
  %274 = vst.msk [vmem:[%s273] sm:$0x1] %vm272, %v271
  %s275 = scalar_lea.vmem %s1, 46
  %276 = vst.msk [vmem:[%s275] sm:$0x2] %vm272, %v271
  %s277 = scalar_lea.vmem %s1, 77
  %278 = vst.msk [vmem:[%s277] sm:$0x4] %vm272, %v271
  %s279 = scalar_lea.vmem %s1, 108
  %280 = vst.msk [vmem:[%s279] sm:$0x8] %vm272, %v271
  %s281 = scalar_lea.vmem %s1, 139
  %282 = vst.msk [vmem:[%s281] sm:$0x10] %vm272, %v271
  %s283 = scalar_lea.vmem %s1, 170
  %284 = vst.msk [vmem:[%s283] sm:$0x20] %vm272, %v271
  %s285 = scalar_lea.vmem %s1, 201
  %286 = vst.msk [vmem:[%s285] sm:$0x40] %vm272, %v271
  %v287 = vld [vmem:[%s0] sm:$0x7f]
  %288 = vrot.lane.b32.xlu0 %v287, 64
  %v289 = vpop.permute.xlu0 %288
  %vm290 = vcmask 31744
  %s291 = scalar_lea.vmem %s1, 16
  %292 = vst.msk [vmem:[%s291] sm:$0x1] %vm290, %v289
  %s293 = scalar_lea.vmem %s1, 47
  %294 = vst.msk [vmem:[%s293] sm:$0x2] %vm290, %v289
  %s295 = scalar_lea.vmem %s1, 78
  %296 = vst.msk [vmem:[%s295] sm:$0x4] %vm290, %v289
  %s297 = scalar_lea.vmem %s1, 109
  %298 = vst.msk [vmem:[%s297] sm:$0x8] %vm290, %v289
  %s299 = scalar_lea.vmem %s1, 140
  %300 = vst.msk [vmem:[%s299] sm:$0x10] %vm290, %v289
  %s301 = scalar_lea.vmem %s1, 171
  %302 = vst.msk [vmem:[%s301] sm:$0x20] %vm290, %v289
  %s303 = scalar_lea.vmem %s1, 202
  %304 = vst.msk [vmem:[%s303] sm:$0x40] %vm290, %v289
  %v305 = vld [vmem:[%s0] sm:$0x7f]
  %306 = vrot.lane.b32.xlu0 %v305, 60
  %v307 = vpop.permute.xlu0 %306
  %vm308 = vcmask 31744
  %s309 = scalar_lea.vmem %s1, 17
  %310 = vst.msk [vmem:[%s309] sm:$0x1] %vm308, %v307
  %s311 = scalar_lea.vmem %s1, 48
  %312 = vst.msk [vmem:[%s311] sm:$0x2] %vm308, %v307
  %s313 = scalar_lea.vmem %s1, 79
  %314 = vst.msk [vmem:[%s313] sm:$0x4] %vm308, %v307
  %s315 = scalar_lea.vmem %s1, 110
  %316 = vst.msk [vmem:[%s315] sm:$0x8] %vm308, %v307
  %s317 = scalar_lea.vmem %s1, 141
  %318 = vst.msk [vmem:[%s317] sm:$0x10] %vm308, %v307
  %s319 = scalar_lea.vmem %s1, 172
  %320 = vst.msk [vmem:[%s319] sm:$0x20] %vm308, %v307
  %s321 = scalar_lea.vmem %s1, 203
  %322 = vst.msk [vmem:[%s321] sm:$0x40] %vm308, %v307
  %v323 = vld [vmem:[%s0] sm:$0x7f]
  %324 = vrot.lane.b32.xlu0 %v323, 56
  %v325 = vpop.permute.xlu0 %324
  %vm326 = vcmask 31744
  %s327 = scalar_lea.vmem %s1, 18
  %328 = vst.msk [vmem:[%s327] sm:$0x1] %vm326, %v325
  %s329 = scalar_lea.vmem %s1, 49
  %330 = vst.msk [vmem:[%s329] sm:$0x2] %vm326, %v325
  %s331 = scalar_lea.vmem %s1, 80
  %332 = vst.msk [vmem:[%s331] sm:$0x4] %vm326, %v325
  %s333 = scalar_lea.vmem %s1, 111
  %334 = vst.msk [vmem:[%s333] sm:$0x8] %vm326, %v325
  %s335 = scalar_lea.vmem %s1, 142
  %336 = vst.msk [vmem:[%s335] sm:$0x10] %vm326, %v325
  %s337 = scalar_lea.vmem %s1, 173
  %338 = vst.msk [vmem:[%s337] sm:$0x20] %vm326, %v325
  %s339 = scalar_lea.vmem %s1, 204
  %340 = vst.msk [vmem:[%s339] sm:$0x40] %vm326, %v325
  %v341 = vld [vmem:[%s0] sm:$0x7f]
  %342 = vrot.lane.b32.xlu0 %v341, 52
  %v343 = vpop.permute.xlu0 %342
  %vm344 = vcmask 31744
  %s345 = scalar_lea.vmem %s1, 19
  %346 = vst.msk [vmem:[%s345] sm:$0x1] %vm344, %v343
  %s347 = scalar_lea.vmem %s1, 50
  %348 = vst.msk [vmem:[%s347] sm:$0x2] %vm344, %v343
  %s349 = scalar_lea.vmem %s1, 81
  %350 = vst.msk [vmem:[%s349] sm:$0x4] %vm344, %v343
  %s351 = scalar_lea.vmem %s1, 112
  %352 = vst.msk [vmem:[%s351] sm:$0x8] %vm344, %v343
  %s353 = scalar_lea.vmem %s1, 143
  %354 = vst.msk [vmem:[%s353] sm:$0x10] %vm344, %v343
  %s355 = scalar_lea.vmem %s1, 174
  %356 = vst.msk [vmem:[%s355] sm:$0x20] %vm344, %v343
  %s357 = scalar_lea.vmem %s1, 205
  %358 = vst.msk [vmem:[%s357] sm:$0x40] %vm344, %v343
  %v359 = vld [vmem:[%s0] sm:$0x7f]
  %360 = vrot.lane.b32.xlu0 %v359, 48
  %v361 = vpop.permute.xlu0 %360
  %vm362 = vcmask 31744
  %s363 = scalar_lea.vmem %s1, 20
  %364 = vst.msk [vmem:[%s363] sm:$0x1] %vm362, %v361
  %s365 = scalar_lea.vmem %s1, 51
  %366 = vst.msk [vmem:[%s365] sm:$0x2] %vm362, %v361
  %s367 = scalar_lea.vmem %s1, 82
  %368 = vst.msk [vmem:[%s367] sm:$0x4] %vm362, %v361
  %s369 = scalar_lea.vmem %s1, 113
  %370 = vst.msk [vmem:[%s369] sm:$0x8] %vm362, %v361
  %s371 = scalar_lea.vmem %s1, 144
  %372 = vst.msk [vmem:[%s371] sm:$0x10] %vm362, %v361
  %s373 = scalar_lea.vmem %s1, 175
  %374 = vst.msk [vmem:[%s373] sm:$0x20] %vm362, %v361
  %s375 = scalar_lea.vmem %s1, 206
  %376 = vst.msk [vmem:[%s375] sm:$0x40] %vm362, %v361
  %v377 = vld [vmem:[%s0] sm:$0x7f]
  %378 = vrot.lane.b32.xlu0 %v377, 44
  %v379 = vpop.permute.xlu0 %378
  %vm380 = vcmask 31744
  %s381 = scalar_lea.vmem %s1, 21
  %382 = vst.msk [vmem:[%s381] sm:$0x1] %vm380, %v379
  %s383 = scalar_lea.vmem %s1, 52
  %384 = vst.msk [vmem:[%s383] sm:$0x2] %vm380, %v379
  %s385 = scalar_lea.vmem %s1, 83
  %386 = vst.msk [vmem:[%s385] sm:$0x4] %vm380, %v379
  %s387 = scalar_lea.vmem %s1, 114
  %388 = vst.msk [vmem:[%s387] sm:$0x8] %vm380, %v379
  %s389 = scalar_lea.vmem %s1, 145
  %390 = vst.msk [vmem:[%s389] sm:$0x10] %vm380, %v379
  %s391 = scalar_lea.vmem %s1, 176
  %392 = vst.msk [vmem:[%s391] sm:$0x20] %vm380, %v379
  %s393 = scalar_lea.vmem %s1, 207
  %394 = vst.msk [vmem:[%s393] sm:$0x40] %vm380, %v379
  %v395 = vld [vmem:[%s0] sm:$0x7f]
  %396 = vrot.lane.b32.xlu0 %v395, 40
  %v397 = vpop.permute.xlu0 %396
  %vm398 = vcmask 31744
  %s399 = scalar_lea.vmem %s1, 22
  %400 = vst.msk [vmem:[%s399] sm:$0x1] %vm398, %v397
  %s401 = scalar_lea.vmem %s1, 53
  %402 = vst.msk [vmem:[%s401] sm:$0x2] %vm398, %v397
  %s403 = scalar_lea.vmem %s1, 84
  %404 = vst.msk [vmem:[%s403] sm:$0x4] %vm398, %v397
  %s405 = scalar_lea.vmem %s1, 115
  %406 = vst.msk [vmem:[%s405] sm:$0x8] %vm398, %v397
  %s407 = scalar_lea.vmem %s1, 146
  %408 = vst.msk [vmem:[%s407] sm:$0x10] %vm398, %v397
  %s409 = scalar_lea.vmem %s1, 177
  %410 = vst.msk [vmem:[%s409] sm:$0x20] %vm398, %v397
  %s411 = scalar_lea.vmem %s1, 208
  %412 = vst.msk [vmem:[%s411] sm:$0x40] %vm398, %v397
  %v413 = vld [vmem:[%s0] sm:$0x7f]
  %414 = vrot.lane.b32.xlu0 %v413, 36
  %v415 = vpop.permute.xlu0 %414
  %vm416 = vcmask 31744
  %s417 = scalar_lea.vmem %s1, 23
  %418 = vst.msk [vmem:[%s417] sm:$0x1] %vm416, %v415
  %s419 = scalar_lea.vmem %s1, 54
  %420 = vst.msk [vmem:[%s419] sm:$0x2] %vm416, %v415
  %s421 = scalar_lea.vmem %s1, 85
  %422 = vst.msk [vmem:[%s421] sm:$0x4] %vm416, %v415
  %s423 = scalar_lea.vmem %s1, 116
  %424 = vst.msk [vmem:[%s423] sm:$0x8] %vm416, %v415
  %s425 = scalar_lea.vmem %s1, 147
  %426 = vst.msk [vmem:[%s425] sm:$0x10] %vm416, %v415
  %s427 = scalar_lea.vmem %s1, 178
  %428 = vst.msk [vmem:[%s427] sm:$0x20] %vm416, %v415
  %s429 = scalar_lea.vmem %s1, 209
  %430 = vst.msk [vmem:[%s429] sm:$0x40] %vm416, %v415
  %v431 = vld [vmem:[%s0] sm:$0x7f]
  %432 = vrot.lane.b32.xlu0 %v431, 32
  %v433 = vpop.permute.xlu0 %432
  %vm434 = vcmask 31744
  %s435 = scalar_lea.vmem %s1, 24
  %436 = vst.msk [vmem:[%s435] sm:$0x1] %vm434, %v433
  %s437 = scalar_lea.vmem %s1, 55
  %438 = vst.msk [vmem:[%s437] sm:$0x2] %vm434, %v433
  %s439 = scalar_lea.vmem %s1, 86
  %440 = vst.msk [vmem:[%s439] sm:$0x4] %vm434, %v433
  %s441 = scalar_lea.vmem %s1, 117
  %442 = vst.msk [vmem:[%s441] sm:$0x8] %vm434, %v433
  %s443 = scalar_lea.vmem %s1, 148
  %444 = vst.msk [vmem:[%s443] sm:$0x10] %vm434, %v433
  %s445 = scalar_lea.vmem %s1, 179
  %446 = vst.msk [vmem:[%s445] sm:$0x20] %vm434, %v433
  %s447 = scalar_lea.vmem %s1, 210
  %448 = vst.msk [vmem:[%s447] sm:$0x40] %vm434, %v433
  %v449 = vld [vmem:[%s0] sm:$0x7f]
  %450 = vrot.lane.b32.xlu0 %v449, 28
  %v451 = vpop.permute.xlu0 %450
  %vm452 = vcmask 31744
  %s453 = scalar_lea.vmem %s1, 25
  %454 = vst.msk [vmem:[%s453] sm:$0x1] %vm452, %v451
  %s455 = scalar_lea.vmem %s1, 56
  %456 = vst.msk [vmem:[%s455] sm:$0x2] %vm452, %v451
  %s457 = scalar_lea.vmem %s1, 87
  %458 = vst.msk [vmem:[%s457] sm:$0x4] %vm452, %v451
  %s459 = scalar_lea.vmem %s1, 118
  %460 = vst.msk [vmem:[%s459] sm:$0x8] %vm452, %v451
  %s461 = scalar_lea.vmem %s1, 149
  %462 = vst.msk [vmem:[%s461] sm:$0x10] %vm452, %v451
  %s463 = scalar_lea.vmem %s1, 180
  %464 = vst.msk [vmem:[%s463] sm:$0x20] %vm452, %v451
  %s465 = scalar_lea.vmem %s1, 211
  %466 = vst.msk [vmem:[%s465] sm:$0x40] %vm452, %v451
  %v467 = vld [vmem:[%s0] sm:$0x7f]
  %468 = vrot.lane.b32.xlu0 %v467, 24
  %v469 = vpop.permute.xlu0 %468
  %vm470 = vcmask 31744
  %s471 = scalar_lea.vmem %s1, 26
  %472 = vst.msk [vmem:[%s471] sm:$0x1] %vm470, %v469
  %s473 = scalar_lea.vmem %s1, 57
  %474 = vst.msk [vmem:[%s473] sm:$0x2] %vm470, %v469
  %s475 = scalar_lea.vmem %s1, 88
  %476 = vst.msk [vmem:[%s475] sm:$0x4] %vm470, %v469
  %s477 = scalar_lea.vmem %s1, 119
  %478 = vst.msk [vmem:[%s477] sm:$0x8] %vm470, %v469
  %s479 = scalar_lea.vmem %s1, 150
  %480 = vst.msk [vmem:[%s479] sm:$0x10] %vm470, %v469
  %s481 = scalar_lea.vmem %s1, 181
  %482 = vst.msk [vmem:[%s481] sm:$0x20] %vm470, %v469
  %s483 = scalar_lea.vmem %s1, 212
  %484 = vst.msk [vmem:[%s483] sm:$0x40] %vm470, %v469
  %v485 = vld [vmem:[%s0] sm:$0x7f]
  %486 = vrot.lane.b32.xlu0 %v485, 20
  %v487 = vpop.permute.xlu0 %486
  %vm488 = vcmask 31744
  %s489 = scalar_lea.vmem %s1, 27
  %490 = vst.msk [vmem:[%s489] sm:$0x1] %vm488, %v487
  %s491 = scalar_lea.vmem %s1, 58
  %492 = vst.msk [vmem:[%s491] sm:$0x2] %vm488, %v487
  %s493 = scalar_lea.vmem %s1, 89
  %494 = vst.msk [vmem:[%s493] sm:$0x4] %vm488, %v487
  %s495 = scalar_lea.vmem %s1, 120
  %496 = vst.msk [vmem:[%s495] sm:$0x8] %vm488, %v487
  %s497 = scalar_lea.vmem %s1, 151
  %498 = vst.msk [vmem:[%s497] sm:$0x10] %vm488, %v487
  %s499 = scalar_lea.vmem %s1, 182
  %500 = vst.msk [vmem:[%s499] sm:$0x20] %vm488, %v487
  %s501 = scalar_lea.vmem %s1, 213
  %502 = vst.msk [vmem:[%s501] sm:$0x40] %vm488, %v487
  %v503 = vld [vmem:[%s0] sm:$0x7f]
  %504 = vrot.lane.b32.xlu0 %v503, 16
  %v505 = vpop.permute.xlu0 %504
  %vm506 = vcmask 31744
  %s507 = scalar_lea.vmem %s1, 28
  %508 = vst.msk [vmem:[%s507] sm:$0x1] %vm506, %v505
  %s509 = scalar_lea.vmem %s1, 59
  %510 = vst.msk [vmem:[%s509] sm:$0x2] %vm506, %v505
  %s511 = scalar_lea.vmem %s1, 90
  %512 = vst.msk [vmem:[%s511] sm:$0x4] %vm506, %v505
  %s513 = scalar_lea.vmem %s1, 121
  %514 = vst.msk [vmem:[%s513] sm:$0x8] %vm506, %v505
  %s515 = scalar_lea.vmem %s1, 152
  %516 = vst.msk [vmem:[%s515] sm:$0x10] %vm506, %v505
  %s517 = scalar_lea.vmem %s1, 183
  %518 = vst.msk [vmem:[%s517] sm:$0x20] %vm506, %v505
  %s519 = scalar_lea.vmem %s1, 214
  %520 = vst.msk [vmem:[%s519] sm:$0x40] %vm506, %v505
  %v521 = vld [vmem:[%s0] sm:$0x7f]
  %522 = vrot.lane.b32.xlu0 %v521, 12
  %v523 = vpop.permute.xlu0 %522
  %vm524 = vcmask 31744
  %s525 = scalar_lea.vmem %s1, 29
  %526 = vst.msk [vmem:[%s525] sm:$0x1] %vm524, %v523
  %s527 = scalar_lea.vmem %s1, 60
  %528 = vst.msk [vmem:[%s527] sm:$0x2] %vm524, %v523
  %s529 = scalar_lea.vmem %s1, 91
  %530 = vst.msk [vmem:[%s529] sm:$0x4] %vm524, %v523
  %s531 = scalar_lea.vmem %s1, 122
  %532 = vst.msk [vmem:[%s531] sm:$0x8] %vm524, %v523
  %s533 = scalar_lea.vmem %s1, 153
  %534 = vst.msk [vmem:[%s533] sm:$0x10] %vm524, %v523
  %s535 = scalar_lea.vmem %s1, 184
  %536 = vst.msk [vmem:[%s535] sm:$0x20] %vm524, %v523
  %s537 = scalar_lea.vmem %s1, 215
  %538 = vst.msk [vmem:[%s537] sm:$0x40] %vm524, %v523
  %v539 = vld [vmem:[%s0] sm:$0x7f]
  %540 = vrot.lane.b32.xlu0 %v539, 8
  %v541 = vpop.permute.xlu0 %540
  %vm542 = vcmask 31744
  %s543 = scalar_lea.vmem %s1, 30
  %544 = vst.msk [vmem:[%s543] sm:$0x1] %vm542, %v541
  %s545 = scalar_lea.vmem %s1, 61
  %546 = vst.msk [vmem:[%s545] sm:$0x2] %vm542, %v541
  %s547 = scalar_lea.vmem %s1, 92
  %548 = vst.msk [vmem:[%s547] sm:$0x4] %vm542, %v541
  %s549 = scalar_lea.vmem %s1, 123
  %550 = vst.msk [vmem:[%s549] sm:$0x8] %vm542, %v541
  %s551 = scalar_lea.vmem %s1, 154
  %552 = vst.msk [vmem:[%s551] sm:$0x10] %vm542, %v541
  %s553 = scalar_lea.vmem %s1, 185
  %554 = vst.msk [vmem:[%s553] sm:$0x20] %vm542, %v541
  %s555 = scalar_lea.vmem %s1, 216
  %556 = vst.msk [vmem:[%s555] sm:$0x40] %vm542, %v541
  %v557 = vld [vmem:[%s0] sm:$0x7f]
  %558 = vrot.lane.b32.xlu0 %v557, 4
  %v559 = vpop.permute.xlu0 %558
  %vm560 = vcmask 31744
  %s561 = scalar_lea.vmem %s1, 31
  %562 = vst.msk [vmem:[%s561] sm:$0x1] %vm560, %v559
  %s563 = scalar_lea.vmem %s1, 62
  %564 = vst.msk [vmem:[%s563] sm:$0x2] %vm560, %v559
  %s565 = scalar_lea.vmem %s1, 93
  %566 = vst.msk [vmem:[%s565] sm:$0x4] %vm560, %v559
  %s567 = scalar_lea.vmem %s1, 124
  %568 = vst.msk [vmem:[%s567] sm:$0x8] %vm560, %v559
  %s569 = scalar_lea.vmem %s1, 155
  %570 = vst.msk [vmem:[%s569] sm:$0x10] %vm560, %v559
  %s571 = scalar_lea.vmem %s1, 186
  %572 = vst.msk [vmem:[%s571] sm:$0x20] %vm560, %v559
  %s573 = scalar_lea.vmem %s1, 217
  %574 = vst.msk [vmem:[%s573] sm:$0x40] %vm560, %v559

// kernel: depthwise_conv_module_forward.1
$region0: #{depthwise_conv_module_forward.1}
  #allocation0 [shape = 'u32[]', space=smem, size = 0x4, offset = 0x4, fixed_abs, tag = 'smem constant byte address 0x4 - core index']
  #allocation1 [shape = 'u32[144,128]{1,0:T(1,128)}', space=vmem, size = 0x12000, scoped, tag = 'internal scratch']
  #allocation2 [shape = 'f32[32,128]{1,0:T(8,128)}', space=vmem, size = 0x4000, scoped, tag = 'scratch operand']
  %s0 = inlined_call_operand.vmem [shape: f32[2,16,32], index: 0, kind: input, shape index: {}, may-alias: {0,1,2}]
  %s1 = inlined_call_operand.vmem [shape: f32[2,16,32], index: 1, kind: input, shape index: {}, may-alias: {0,1,2}]
  %s2 = inlined_call_operand.vmem [shape: f32[2,16,32], index: 2, kind: input, shape index: {}, may-alias: {0,1,2}]
  %s3 = inlined_call_operand.vmem [shape: f32[1,32], index: 3, kind: input, shape index: {}]
  %s4 = inlined_call_operand.vmem [shape: f32[1,32], index: 4, kind: input, shape index: {}]
  %s5 = inlined_call_operand.vmem [shape: f32[1,7,128], index: 5, kind: input, shape index: {}]
  %s6 = inlined_call_operand.vmem [shape: f32[1,128], index: 6, kind: input, shape index: {}]
  %s7 = inlined_call_operand.vmem [shape: bf16[128,32], index: 7, kind: input, shape index: {}]
  %s8 = inlined_call_operand.vmem [shape: f32[1,32], index: 8, kind: input, shape index: {}]
  %s9 = inlined_call_operand.hbm [shape: f32[2,16,32], index: 9, kind: output, shape index: {}]
  %s10 = sld [smem:[#allocation0]]
  $region69: #{depthwise_conv_module_forward.1} parent=0
    _
  %s12 = ssub.s32 1, %s10
  %s13 = scalar_select 0, %s12, %s10
  $region1: #{depthwise_conv_module_forward.1} parent=0
    #allocation3 [shape = 'u8[16384]{0}', space=vmem, size = 0x4000, scoped, tag = 'output window, operand 0']
    #allocation4 [shape = 's32[2]{0}', space=sflag, size = 0x8, scoped, tag = 'scoped memory for depthwise_conv_module_forward.1']
    %14 = vsyncpa [#allocation4], 0
    %s15 = scalar_lea.sflag [#allocation4], 1
    %16 = vsyncpa %s15, 0
    loop: start=0, step=1, limit=4
    $region2: #{depthwise_conv_module_forward.1} parent=1 // loop_pre_header
      _
    $region3: #{depthwise_conv_module_forward.1} parent=1 // loop_header
      %s18 = sphi 0, %s22
      %p19 = scmp.ge.s32.totalorder %s18, 4
      %s25 = sphi 0, %s37
      %s26 = sphi 0, %s33
      %s27 = sphi 0, %s25
      %s28 = sphi 0, %s26
      %s29 = sphi 0, %s27
      %s30 = sphi 0, %s28
      %s42 = sphi 0, %s44
      %s45 = sphi 0, %s42
      %s46 = sphi 0, %s45
      %s62 = sphi 0, %s46
      %s78 = sphi 0, %s80
      %s81 = sphi 0, %s78
      %s82 = sphi 0, %s81
      %s98 = sphi 0, %s82
      %s114 = sphi 0, %s116
      %s117 = sphi 0, %s114
      %s118 = sphi 0, %s117
      %s134 = sphi 0, %s118
      %s138 = sphi 0, %s138
      %s140 = sphi 0, %s138
      %s141 = sphi 0, %s140
      %s155 = sphi 0, %s141
      %s159 = sphi 0, %s159
      %s161 = sphi 0, %s159
      %s162 = sphi 0, %s161
      %s176 = sphi 0, %s162
      %s180 = sphi 0, %s180
      %s182 = sphi 0, %s180
      %s183 = sphi 0, %s182
      %s197 = sphi 0, %s183
      %s201 = sphi 0, %s201
      %s203 = sphi 0, %s201
      %s204 = sphi 0, %s203
      %s218 = sphi 0, %s204
      %s222 = sphi 0, %s222
      %s224 = sphi 0, %s222
      %s225 = sphi 0, %s224
      %s239 = sphi 0, %s225
      %s243 = sphi 0, %s243
      %s245 = sphi 0, %s243
      %s246 = sphi 0, %s245
      %s260 = sphi 0, %s246
      %s268 = sphi 0, %s270
      %s271 = sphi 0, %s268
      %s272 = sphi 0, %s271
      %s288 = sphi 0, %s272
    $region4: #{depthwise_conv_module_forward.1} parent=1 // loop_header_branch
      %21 = sbr.rel (%p19) target = $region8
    $region5: #{depthwise_conv_module_forward.1} parent=1 // loop_body
      %s23 = ssub.s32 %s18, 1
      %s24 = ssub.s32 %s18, 2
      %s31 = sadd.s32 1, %s26
      %p32 = scmp.ge.s32.totalorder %s31, 1
      %s33 = scalar_select %p32, 0, %s31
      %s34 = sadd.s32 1, %s25
      %s35 = scalar_select %p32, %s34, %s25
      %p36 = scmp.ge.s32.totalorder %s35, 2
      %s37 = scalar_select %p36, 0, %s35
      %s38 = ssub.s32 %s25, %s37
      %s39 = ssub.s32 %s26, %s33
      %s40 = sor.u32 %s38, %s39
      %p41 = scmp.eq.s32.totalorder %s40, 0
      %s43 = sadd.s32 %s42, 1
      %s44 = scalar_select %p41, %s42, %s43
      %p47 = pneg %p41
      %p48 = scmp.eq.s32.totalorder %s18, 1
      %p49 = por %p47, %p48
      %p50 = scmp.ne.s32.totalorder %s42, %s45
      %p51 = scmp.eq.s32.totalorder %s18, 0
      %p52 = por %p50, %p51
      %p53 = scmp.ne.s32.totalorder %s42, %s45
      %p54 = scmp.eq.s32.totalorder %s23, 1
      %p55 = por %p53, %p54
      %p56 = scmp.ne.s32.totalorder %s45, %s46
      %p57 = scmp.eq.s32.totalorder %s23, 0
      %p58 = por %p56, %p57
      %p59 = scmp.ne.s32.totalorder %s45, %s46
      %p60 = scmp.eq.s32.totalorder %s24, 1
      %p61 = por %p59, %p60
      %p63 = scmp.ne.s32.totalorder %s46, %s62
      %p64 = scmp.eq.s32.totalorder %s24, 0
      %p65 = por %p63, %p64
      %s66 = smul.u32 %s26, 2
      %s67 = ssub.s32 %s66, 1
      %p68 = scmp.gt.s32.totalorder %s67, 0
      %s69 = scalar_select %p68, %s67, 0
      %s70 = smul.u32 %s33, 2
      %s71 = ssub.s32 %s70, 1
      %p72 = scmp.gt.s32.totalorder %s71, 0
      %s73 = scalar_select %p72, %s71, 0
      %s74 = ssub.s32 %s25, %s37
      %s75 = ssub.s32 %s69, %s73
      %s76 = sor.u32 %s74, %s75
      %p77 = scmp.eq.s32.totalorder %s76, 0
      %s79 = sadd.s32 %s78, 1
      %s80 = scalar_select %p77, %s78, %s79
      %p83 = pneg %p77
      %p84 = scmp.eq.s32.totalorder %s18, 1
      %p85 = por %p83, %p84
      %p86 = scmp.ne.s32.totalorder %s78, %s81
      %p87 = scmp.eq.s32.totalorder %s18, 0
      %p88 = por %p86, %p87
      %p89 = scmp.ne.s32.totalorder %s78, %s81
      %p90 = scmp.eq.s32.totalorder %s23, 1
      %p91 = por %p89, %p90
      %p92 = scmp.ne.s32.totalorder %s81, %s82
      %p93 = scmp.eq.s32.totalorder %s23, 0
      %p94 = por %p92, %p93
      %p95 = scmp.ne.s32.totalorder %s81, %s82
      %p96 = scmp.eq.s32.totalorder %s24, 1
      %p97 = por %p95, %p96
      %p99 = scmp.ne.s32.totalorder %s82, %s98
      %p100 = scmp.eq.s32.totalorder %s24, 0
      %p101 = por %p99, %p100
      %s102 = sadd.s32 %s26, 1
      %s103 = smul.u32 %s102, 2
      %p104 = scmp.lt.s32.totalorder %s103, 1
      %s105 = scalar_select %p104, %s103, 1
      %s106 = sadd.s32 %s33, 1
      %s107 = smul.u32 %s106, 2
      %p108 = scmp.lt.s32.totalorder %s107, 1
      %s109 = scalar_select %p108, %s107, 1
      %s110 = ssub.s32 %s25, %s37
      %s111 = ssub.s32 %s105, %s109
      %s112 = sor.u32 %s110, %s111
      %p113 = scmp.eq.s32.totalorder %s112, 0
      %s115 = sadd.s32 %s114, 1
      %s116 = scalar_select %p113, %s114, %s115
      %p119 = pneg %p113
      %p120 = scmp.eq.s32.totalorder %s18, 1
      %p121 = por %p119, %p120
      %p122 = scmp.ne.s32.totalorder %s114, %s117
      %p123 = scmp.eq.s32.totalorder %s18, 0
      %p124 = por %p122, %p123
      %p125 = scmp.ne.s32.totalorder %s114, %s117
      %p126 = scmp.eq.s32.totalorder %s23, 1
      %p127 = por %p125, %p126
      %p128 = scmp.ne.s32.totalorder %s117, %s118
      %p129 = scmp.eq.s32.totalorder %s23, 0
      %p130 = por %p128, %p129
      %p131 = scmp.ne.s32.totalorder %s117, %s118
      %p132 = scmp.eq.s32.totalorder %s24, 1
      %p133 = por %p131, %p132
      %p135 = scmp.ne.s32.totalorder %s118, %s134
      %p136 = scmp.eq.s32.totalorder %s24, 0
      %p137 = por %p135, %p136
      %s139 = sadd.s32 %s138, 1
      %p142 = scmp.eq.s32.totalorder %s18, 1
      %p143 = scmp.ne.s32.totalorder %s138, %s140
      %p144 = scmp.eq.s32.totalorder %s18, 0
      %p145 = por %p143, %p144
      %p146 = scmp.ne.s32.totalorder %s138, %s140
      %p147 = scmp.eq.s32.totalorder %s23, 1
      %p148 = por %p146, %p147
      %p149 = scmp.ne.s32.totalorder %s140, %s141
      %p150 = scmp.eq.s32.totalorder %s23, 0
      %p151 = por %p149, %p150
      %p152 = scmp.ne.s32.totalorder %s140, %s141
      %p153 = scmp.eq.s32.totalorder %s24, 1
      %p154 = por %p152, %p153
      %p156 = scmp.ne.s32.totalorder %s141, %s155
      %p157 = scmp.eq.s32.totalorder %s24, 0
      %p158 = por %p156, %p157
      %s160 = sadd.s32 %s159, 1
      %p163 = scmp.eq.s32.totalorder %s18, 1
      %p164 = scmp.ne.s32.totalorder %s159, %s161
      %p165 = scmp.eq.s32.totalorder %s18, 0
      %p166 = por %p164, %p165
      %p167 = scmp.ne.s32.totalorder %s159, %s161
      %p168 = scmp.eq.s32.totalorder %s23, 1
      %p169 = por %p167, %p168
      %p170 = scmp.ne.s32.totalorder %s161, %s162
      %p171 = scmp.eq.s32.totalorder %s23, 0
      %p172 = por %p170, %p171
      %p173 = scmp.ne.s32.totalorder %s161, %s162
      %p174 = scmp.eq.s32.totalorder %s24, 1
      %p175 = por %p173, %p174
      %p177 = scmp.ne.s32.totalorder %s162, %s176
      %p178 = scmp.eq.s32.totalorder %s24, 0
      %p179 = por %p177, %p178
      %s181 = sadd.s32 %s180, 1
      %p184 = scmp.eq.s32.totalorder %s18, 1
      %p185 = scmp.ne.s32.totalorder %s180, %s182
      %p186 = scmp.eq.s32.totalorder %s18, 0
      %p187 = por %p185, %p186
      %p188 = scmp.ne.s32.totalorder %s180, %s182
      %p189 = scmp.eq.s32.totalorder %s23, 1
      %p190 = por %p188, %p189
      %p191 = scmp.ne.s32.totalorder %s182, %s183
      %p192 = scmp.eq.s32.totalorder %s23, 0
      %p193 = por %p191, %p192
      %p194 = scmp.ne.s32.totalorder %s182, %s183
      %p195 = scmp.eq.s32.totalorder %s24, 1
      %p196 = por %p194, %p195
      %p198 = scmp.ne.s32.totalorder %s183, %s197
      %p199 = scmp.eq.s32.totalorder %s24, 0
      %p200 = por %p198, %p199
      %s202 = sadd.s32 %s201, 1
      %p205 = scmp.eq.s32.totalorder %s18, 1
      %p206 = scmp.ne.s32.totalorder %s201, %s203
      %p207 = scmp.eq.s32.totalorder %s18, 0
      %p208 = por %p206, %p207
      %p209 = scmp.ne.s32.totalorder %s201, %s203
      %p210 = scmp.eq.s32.totalorder %s23, 1
      %p211 = por %p209, %p210
      %p212 = scmp.ne.s32.totalorder %s203, %s204
      %p213 = scmp.eq.s32.totalorder %s23, 0
      %p214 = por %p212, %p213
      %p215 = scmp.ne.s32.totalorder %s203, %s204
      %p216 = scmp.eq.s32.totalorder %s24, 1
      %p217 = por %p215, %p216
      %p219 = scmp.ne.s32.totalorder %s204, %s218
      %p220 = scmp.eq.s32.totalorder %s24, 0
      %p221 = por %p219, %p220
      %s223 = sadd.s32 %s222, 1
      %p226 = scmp.eq.s32.totalorder %s18, 1
      %p227 = scmp.ne.s32.totalorder %s222, %s224
      %p228 = scmp.eq.s32.totalorder %s18, 0
      %p229 = por %p227, %p228
      %p230 = scmp.ne.s32.totalorder %s222, %s224
      %p231 = scmp.eq.s32.totalorder %s23, 1
      %p232 = por %p230, %p231
      %p233 = scmp.ne.s32.totalorder %s224, %s225
      %p234 = scmp.eq.s32.totalorder %s23, 0
      %p235 = por %p233, %p234
      %p236 = scmp.ne.s32.totalorder %s224, %s225
      %p237 = scmp.eq.s32.totalorder %s24, 1
      %p238 = por %p236, %p237
      %p240 = scmp.ne.s32.totalorder %s225, %s239
      %p241 = scmp.eq.s32.totalorder %s24, 0
      %p242 = por %p240, %p241
      %s244 = sadd.s32 %s243, 1
      %p247 = scmp.eq.s32.totalorder %s18, 1
      %p248 = scmp.ne.s32.totalorder %s243, %s245
      %p249 = scmp.eq.s32.totalorder %s18, 0
      %p250 = por %p248, %p249
      %p251 = scmp.ne.s32.totalorder %s243, %s245
      %p252 = scmp.eq.s32.totalorder %s23, 1
      %p253 = por %p251, %p252
      %p254 = scmp.ne.s32.totalorder %s245, %s246
      %p255 = scmp.eq.s32.totalorder %s23, 0
      %p256 = por %p254, %p255
      %p257 = scmp.ne.s32.totalorder %s245, %s246
      %p258 = scmp.eq.s32.totalorder %s24, 1
      %p259 = por %p257, %p258
      %p261 = scmp.ne.s32.totalorder %s246, %s260
      %p262 = scmp.eq.s32.totalorder %s24, 0
      %p263 = por %p261, %p262
      %s264 = ssub.s32 %s25, %s37
      %s265 = ssub.s32 %s26, %s33
      %s266 = sor.u32 %s264, %s265
      %p267 = scmp.eq.s32.totalorder %s266, 0
      %s269 = sadd.s32 %s268, 1
      %s270 = scalar_select %p267, %s268, %s269
      %p273 = pneg %p267
      %p274 = scmp.eq.s32.totalorder %s18, 1
      %p275 = por %p273, %p274
      %p276 = scmp.ne.s32.totalorder %s268, %s271
      %p277 = scmp.eq.s32.totalorder %s18, 0
      %p278 = por %p276, %p277
      %p279 = scmp.ne.s32.totalorder %s268, %s271
      %p280 = scmp.eq.s32.totalorder %s23, 1
      %p281 = por %p279, %p280
      %p282 = scmp.ne.s32.totalorder %s271, %s272
      %p283 = scmp.eq.s32.totalorder %s23, 0
      %p284 = por %p282, %p283
      %p285 = scmp.ne.s32.totalorder %s271, %s272
      %p286 = scmp.eq.s32.totalorder %s24, 1
      %p287 = por %p285, %p286
      %p289 = scmp.ne.s32.totalorder %s272, %s288
      %p290 = scmp.eq.s32.totalorder %s24, 0
      %p291 = por %p289, %p290
      %p292 = scmp.le.s32.totalorder 1, %s18
      %p293 = scmp.lt.s32.totalorder %s18, 3
      %p294 = pnand %p292, %p293
      %p295 = pneg %p294
      // Predicated region
      $region9: #{depthwise_conv_module_forward.1} parent=5 // pred_check
        _
      $region10: #{depthwise_conv_module_forward.1} parent=5 // pred_check_branch
        %297 = sbr.rel (%p294) target = $region12
      $region11: #{depthwise_conv_module_forward.1} parent=5 // pred_region
        %s298 = ssub.s32 %s18, 1
        // Predicated region
        $region13: #{depthwise_conv_module_forward.1} parent=11 // pred_check
          %p299 = pneg %p151
        $region14: #{depthwise_conv_module_forward.1} parent=11 // pred_check_branch
          %301 = sbr.rel (%p299) target = $region16
        $region15: #{depthwise_conv_module_forward.1} parent=11 // pred_region
          _
        $region16: #{depthwise_conv_module_forward.1} parent=11 // pred_fallthru
          _
        // Predicated region
        $region17: #{depthwise_conv_module_forward.1} parent=11 // pred_check
          %p302 = pneg %p172
        $region18: #{depthwise_conv_module_forward.1} parent=11 // pred_check_branch
          %304 = sbr.rel (%p302) target = $region20
        $region19: #{depthwise_conv_module_forward.1} parent=11 // pred_region
          _
        $region20: #{depthwise_conv_module_forward.1} parent=11 // pred_fallthru
          _
        // Predicated region
        $region21: #{depthwise_conv_module_forward.1} parent=11 // pred_check
          %p305 = pneg %p193
        $region22: #{depthwise_conv_module_forward.1} parent=11 // pred_check_branch
          %307 = sbr.rel (%p305) target = $region24
        $region23: #{depthwise_conv_module_forward.1} parent=11 // pred_region
          _
        $region24: #{depthwise_conv_module_forward.1} parent=11 // pred_fallthru
          _
        // Predicated region
        $region25: #{depthwise_conv_module_forward.1} parent=11 // pred_check
          %p308 = pneg %p214
        $region26: #{depthwise_conv_module_forward.1} parent=11 // pred_check_branch
          %310 = sbr.rel (%p308) target = $region28
        $region27: #{depthwise_conv_module_forward.1} parent=11 // pred_region
          _
        $region28: #{depthwise_conv_module_forward.1} parent=11 // pred_fallthru
          _
        // Predicated region
        $region29: #{depthwise_conv_module_forward.1} parent=11 // pred_check
          %p311 = pneg %p235
        $region30: #{depthwise_conv_module_forward.1} parent=11 // pred_check_branch
          %313 = sbr.rel (%p311) target = $region32
        $region31: #{depthwise_conv_module_forward.1} parent=11 // pred_region
          _
        $region32: #{depthwise_conv_module_forward.1} parent=11 // pred_fallthru
          _
        // Predicated region
        $region33: #{depthwise_conv_module_forward.1} parent=11 // pred_check
          %p314 = pneg %p256
        $region34: #{depthwise_conv_module_forward.1} parent=11 // pred_check_branch
          %316 = sbr.rel (%p314) target = $region36
        $region35: #{depthwise_conv_module_forward.1} parent=11 // pred_region
          _
        $region36: #{depthwise_conv_module_forward.1} parent=11 // pred_fallthru
          _
      $region12: #{depthwise_conv_module_forward.1} parent=5 // pred_fallthru
        _
      %p317 = scmp.lt.s32.totalorder %s18, 2
      // Predicated region
      $region37: #{depthwise_conv_module_forward.1} parent=5 // pred_check
        %p318 = pneg %p317
      $region38: #{depthwise_conv_module_forward.1} parent=5 // pred_check_branch
        %320 = sbr.rel (%p318) target = $region40
      $region39: #{depthwise_conv_module_forward.1} parent=5 // pred_region
        // Predicated region
        $region41: #{depthwise_conv_module_forward.1} parent=39 // pred_check
          %p321 = pneg %p52
        $region42: #{depthwise_conv_module_forward.1} parent=39 // pred_check_branch
          %323 = sbr.rel (%p321) target = $region44
        $region43: #{depthwise_conv_module_forward.1} parent=39 // pred_region
          %s324 = smul.u32 2, %s26
          %p325 = scmp.lt.s32.totalorder %s25, 1
          %s326 = scalar_select %p325, %s25, 1
          %p327 = scmp.lt.s32.totalorder %s324, 1
          %s328 = scalar_select %p327, %s324, 1
          %s329 = smul.addr %s326, 2
          %s330 = sadd.s32 %s328, %s329
          %s331 = smul.addr %s330, 8
          %s332 = scalar_lea.vmem %s0, %s331
          %s333 = smul.u32 2, %s26
        $region44: #{depthwise_conv_module_forward.1} parent=39 // pred_fallthru
          _
        // Predicated region
        $region45: #{depthwise_conv_module_forward.1} parent=39 // pred_check
          %p334 = pneg %p88
        $region46: #{depthwise_conv_module_forward.1} parent=39 // pred_check_branch
          %336 = sbr.rel (%p334) target = $region48
        $region47: #{depthwise_conv_module_forward.1} parent=39 // pred_region
          %s337 = smul.u32 %s26, 2
          %s338 = ssub.s32 %s337, 1
          %p339 = scmp.gt.s32.totalorder %s338, 0
          %s340 = scalar_select %p339, %s338, 0
          %p341 = scmp.lt.s32.totalorder %s25, 1
          %s342 = scalar_select %p341, %s25, 1
          %p343 = scmp.lt.s32.totalorder %s340, 1
          %s344 = scalar_select %p343, %s340, 1
          %s345 = smul.addr %s342, 2
          %s346 = sadd.s32 %s344, %s345
          %s347 = smul.addr %s346, 8
          %s348 = scalar_lea.vmem %s1, %s347
          %s349 = smul.u32 %s26, 2
          %s350 = ssub.s32 %s349, 1
          %p351 = scmp.gt.s32.totalorder %s350, 0
          %s352 = scalar_select %p351, %s350, 0
        $region48: #{depthwise_conv_module_forward.1} parent=39 // pred_fallthru
          _
        // Predicated region
        $region49: #{depthwise_conv_module_forward.1} parent=39 // pred_check
          %p353 = pneg %p124
        $region50: #{depthwise_conv_module_forward.1} parent=39 // pred_check_branch
          %355 = sbr.rel (%p353) target = $region52
        $region51: #{depthwise_conv_module_forward.1} parent=39 // pred_region
          %s356 = sadd.s32 %s26, 1
          %s357 = smul.u32 %s356, 2
          %p358 = scmp.lt.s32.totalorder %s357, 1
          %s359 = scalar_select %p358, %s357, 1
          %p360 = scmp.lt.s32.totalorder %s25, 1
          %s361 = scalar_select %p360, %s25, 1
          %p362 = scmp.lt.s32.totalorder %s359, 1
          %s363 = scalar_select %p362, %s359, 1
          %s364 = smul.addr %s361, 2
          %s365 = sadd.s32 %s363, %s364
          %s366 = smul.addr %s365, 8
          %s367 = scalar_lea.vmem %s2, %s366
          %s368 = sadd.s32 %s26, 1
          %s369 = smul.u32 %s368, 2
          %p370 = scmp.lt.s32.totalorder %s369, 1
          %s371 = scalar_select %p370, %s369, 1
        $region52: #{depthwise_conv_module_forward.1} parent=39 // pred_fallthru
          _
      $region40: #{depthwise_conv_module_forward.1} parent=5 // pred_fallthru
        _
      %p372 = scmp.le.s32.totalorder 1, %s18
      %p373 = scmp.lt.s32.totalorder %s18, 3
      %p374 = pnand %p372, %p373
      %p375 = pneg %p374
      // Predicated region
      $region53: #{depthwise_conv_module_forward.1} parent=5 // pred_check
        _
      $region54: #{depthwise_conv_module_forward.1} parent=5 // pred_check_branch
        %377 = sbr.rel (%p374) target = $region56
      $region55: #{depthwise_conv_module_forward.1} parent=5 // pred_region
        %s378 = ssub.s32 %s18, 1
        %s379 = smul.u32 2, %s28
        %p380 = scmp.lt.s32.totalorder %s27, 1
        %s381 = scalar_select %p380, %s27, 1
        %p382 = scmp.lt.s32.totalorder %s379, 1
        %s383 = scalar_select %p382, %s379, 1
        %s384 = smul.addr %s381, 2
        %s385 = sadd.s32 %s383, %s384
        %s386 = smul.addr %s385, 8
        %s387 = scalar_lea.vmem %s0, %s386
        %p388 = pneg %p58
        %p389 = pneg %p55
        %s390 = smul.u32 %s28, 2
        %s391 = ssub.s32 %s390, 1
        %p392 = scmp.gt.s32.totalorder %s391, 0
        %s393 = scalar_select %p392, %s391, 0
        %p394 = scmp.lt.s32.totalorder %s27, 1
        %s395 = scalar_select %p394, %s27, 1
        %p396 = scmp.lt.s32.totalorder %s393, 1
        %s397 = scalar_select %p396, %s393, 1
        %s398 = smul.addr %s395, 2
        %s399 = sadd.s32 %s397, %s398
        %s400 = smul.addr %s399, 8
        %s401 = scalar_lea.vmem %s1, %s400
        %p402 = pneg %p94
        %p403 = pneg %p91
        %s404 = sadd.s32 %s28, 1
        %s405 = smul.u32 %s404, 2
        %p406 = scmp.lt.s32.totalorder %s405, 1
        %s407 = scalar_select %p406, %s405, 1
        %p408 = scmp.lt.s32.totalorder %s27, 1
        %s409 = scalar_select %p408, %s27, 1
        %p410 = scmp.lt.s32.totalorder %s407, 1
        %s411 = scalar_select %p410, %s407, 1
        %s412 = smul.addr %s409, 2
        %s413 = sadd.s32 %s411, %s412
        %s414 = smul.addr %s413, 8
        %s415 = scalar_lea.vmem %s2, %s414
        %p416 = pneg %p130
        %p417 = pneg %p127
        %p418 = pneg %p151
        %p419 = pneg %p148
        %p420 = pneg %p172
        %p421 = pneg %p169
        %p422 = pneg %p193
        %p423 = pneg %p190
        %p424 = pneg %p214
        %p425 = pneg %p211
        %p426 = pneg %p235
        %p427 = pneg %p232
        %p428 = pneg %p256
        %p429 = pneg %p253
        %p430 = pneg %p284
        %p431 = pneg %p281
        %s432 = sand.u32 %s271, 1
        %s433 = scalar_lea.sflag [#allocation4], %s432
        %s434 = sand.u32 %s271, 1
        %s435 = smul.addr %s434, 16
        %s436 = scalar_lea.vmem [#allocation3], %s435
        %s437 = smul.u32 2, %s28
        %p438 = scmp.lt.s32.totalorder %s27, 1
        %s439 = scalar_select %p438, %s27, 1
        %p440 = scmp.lt.s32.totalorder %s437, 1
        %s441 = scalar_select %p440, %s437, 1
        %s442 = smul.addr %s439, 2
        %s443 = sadd.s32 %s441, %s442
        %s444 = smul.addr %s443, 8
        %s445 = scalar_lea.vmem %s0, %s444
        %s446 = smul.u32 2, %s28
        %s447 = smul.u32 %s28, 2
        %s448 = ssub.s32 %s447, 1
        %p449 = scmp.gt.s32.totalorder %s448, 0
        %s450 = scalar_select %p449, %s448, 0
        %p451 = scmp.lt.s32.totalorder %s27, 1
        %s452 = scalar_select %p451, %s27, 1
        %p453 = scmp.lt.s32.totalorder %s450, 1
        %s454 = scalar_select %p453, %s450, 1
        %s455 = smul.addr %s452, 2
        %s456 = sadd.s32 %s454, %s455
        %s457 = smul.addr %s456, 8
        %s458 = scalar_lea.vmem %s1, %s457
        %s459 = smul.u32 %s28, 2
        %s460 = ssub.s32 %s459, 1
        %p461 = scmp.gt.s32.totalorder %s460, 0
        %s462 = scalar_select %p461, %s460, 0
        %s463 = sadd.s32 %s28, 1
        %s464 = smul.u32 %s463, 2
        %p465 = scmp.lt.s32.totalorder %s464, 1
        %s466 = scalar_select %p465, %s464, 1
        %p467 = scmp.lt.s32.totalorder %s27, 1
        %s468 = scalar_select %p467, %s27, 1
        %p469 = scmp.lt.s32.totalorder %s466, 1
        %s470 = scalar_select %p469, %s466, 1
        %s471 = smul.addr %s468, 2
        %s472 = sadd.s32 %s470, %s471
        %s473 = smul.addr %s472, 8
        %s474 = scalar_lea.vmem %s2, %s473
        %s475 = sadd.s32 %s28, 1
        %s476 = smul.u32 %s475, 2
        %p477 = scmp.lt.s32.totalorder %s476, 1
        %s478 = scalar_select %p477, %s476, 1
        %s479 = smul.u32 2, %s28
        %v481 = vld [vmem:[%s3] sm:$0x1]
        %v482 = vld [vmem:[%s4] sm:$0x1]
        %v483 = vlaneseq
        %v484 = vshrl.u32 %v483, 7
        %v485 = vadd.s32 %v484, 8
        %s486 = smul.u32 %s28, 16
        %v487 = vstv %s486
        %v488 = vadd.s32 %v484, %v487
        %v489 = vadd.s32 %v485, %v487
        %v490 = vld [vmem:[%s445] sm:$0xff]
        %v491 = vld [vmem:[%s445 + $0x8] sm:$0xff]
        %vm492 = vcmask 261120
        %v493 = vsel %vm492, %v490, 0.0
        %494 = vadd.xlane.f32.xlu0 %v493
        %v495 = vpop.xlane.xlu0 %494
        %v496 = vsel %vm492, %v491, 0.0
        %497 = vadd.xlane.f32.xlu0 %v496
        %v498 = vpop.xlane.xlu0 %497
        %v499 = vrcp.pop 32.0
        %v500 = vmul.f32 %v495, %v499
        %v501 = vmul.f32 %v498, %v499
        %v502 = vsub.f32 %v490, %v500
        %v503 = vsub.f32 %v491, %v501
        %v504 = vmul.f32 %v502, %v502
        %v505 = vmul.f32 %v503, %v503
        %v506 = vsel %vm492, %v504, 0.0
        %507 = vadd.xlane.f32.xlu0 %v506
        %v508 = vpop.xlane.xlu0 %507
        %v509 = vsel %vm492, %v505, 0.0
        %510 = vadd.xlane.f32.xlu0 %v509
        %v511 = vpop.xlane.xlu0 %510
        %v512 = vmul.f32 %v508, %v499
        %v513 = vmul.f32 %v511, %v499
        %v514 = vadd.f32 %v512, 1e-05
        %v515 = vadd.f32 %v513, 1e-05
        %v516 = vrsqrt.pop %v514
        %v517 = vrsqrt.pop %v515
        %v518 = vmul.f32 %v502, %v516
        %v519 = vmul.f32 %v503, %v517
        %v521 = vlaneseq
        %v522 = vshrl.u32 %v521, 7
        %v523 = vsub.s32 0, %v522
        %v524 = vrot.slane %v481, %v523
        %v526 = vmul.f32 %v518, %v524
        %v527 = vmul.f32 %v519, %v524
        %v529 = vlaneseq
        %v530 = vshrl.u32 %v529, 7
        %v531 = vsub.s32 0, %v530
        %v532 = vrot.slane %v482, %v531
        %v534 = vadd.f32 %v526, %v532
        %v535 = vadd.f32 %v527, %v532
        %vm536 = vcmp.lt.s32.totalorder %v488, 16
        %vm537 = vcmp.lt.s32.totalorder %v489, 16
        %v538 = vsel %vm536, 1, 0
        %v539 = vsel %vm537, 1, 0
        %vm540 = vcmp.eq.s32.totalorder %v538, 1
        %vm541 = vcmp.eq.s32.totalorder %v539, 1
        %v542 = vsel %vm540, %v534, 0.0
        %v543 = vsel %vm541, %v535, 0.0
        %546 = vrot.lane.b32.xlu0 %v542, 32
        %v547 = vpop.permute.xlu0 %546
        %548 = vrot.lane.b32.xlu0 %v543, 32
        %v549 = vpop.permute.xlu0 %548
        %552 = vrot.lane.b32.xlu0 %v542, 64
        %v553 = vpop.permute.xlu0 %552
        %554 = vrot.lane.b32.xlu0 %v543, 64
        %v555 = vpop.permute.xlu0 %554
        %558 = vrot.lane.b32.xlu0 %v542, 96
        %v559 = vpop.permute.xlu0 %558
        %560 = vrot.lane.b32.xlu0 %v543, 96
        %v561 = vpop.permute.xlu0 %560
        %v564 = vsel %vm492, %v542, %v547
        %v565 = vsel %vm492, %v543, %v549
        %vm566 = vcmask 523264
        %v567 = vsel %vm566, %v564, %v553
        %v568 = vsel %vm566, %v565, %v555
        %vm569 = vcmask 785408
        %v570 = vsel %vm569, %v567, %v559
        %v571 = vsel %vm569, %v568, %v561
        %572 = vst [vmem:[#allocation2 + $0x8] sm:$0xff] %v570
        %573 = vst [vmem:[#allocation2 + $0x10] sm:$0xff] %v571
        %s574 = ssub.s32 %s486, 3
        %v575 = vstv %s574
        %v576 = vadd.s32 %v484, %v575
        %v577 = vld [vmem:[%s458] sm:$0xff]
        %vm578 = vcmask 261125
        %v579 = vsel %vm578, %v577, 0.0
        %580 = vadd.xlane.f32.xlu0 %v579
        %v581 = vpop.xlane.xlu0 %580
        %v582 = vmul.f32 %v581, %v499
        %v583 = vsub.f32 %v577, %v582
        %v584 = vmul.f32 %v583, %v583
        %v585 = vsel %vm578, %v584, 0.0
        %586 = vadd.xlane.f32.xlu0 %v585
        %v587 = vpop.xlane.xlu0 %586
        %v588 = vmul.f32 %v587, %v499
        %v589 = vadd.f32 %v588, 1e-05
        %v590 = vrsqrt.pop %v589
        %v591 = vmul.f32 %v583, %v590
        %v592 = vmul.f32 %v591, %v524
        %v593 = vadd.f32 %v592, %v532
        %vm594 = vcmp.ge.s32.totalorder %v576, 0
        %vm595 = vcmp.lt.s32.totalorder %v576, 16
        %vm596 = vmand %vm594, %vm595
        %v597 = vsel %vm596, 1, 0
        %vm598 = vcmp.eq.s32.totalorder %v597, 1
        %v600 = vrot.slane %v593, 5
        %v602 = vsel %vm598, %v600, 0.0
        %604 = vrot.lane.b32.xlu0 %v602, 32
        %v605 = vpop.permute.xlu0 %604
        %607 = vrot.lane.b32.xlu0 %v602, 64
        %v608 = vpop.permute.xlu0 %607
        %610 = vrot.lane.b32.xlu0 %v602, 96
        %v611 = vpop.permute.xlu0 %610
        %v613 = vsel %vm492, %v602, %v605
        %v614 = vsel %vm566, %v613, %v608
        %v615 = vsel %vm569, %v614, %v611
        %616 = vst [vmem:[#allocation2 + $0x5] sm:$0x7] %v615
        %s617 = sadd.s32 %s28, 1
        %s618 = smul.u32 %s617, 16
        %v619 = vstv %s618
        %v620 = vadd.s32 %v484, %v619
        %v621 = vld [vmem:[%s474] sm:$0xff]
        %vm622 = vcmask 256000
        %v623 = vsel %vm622, %v621, 0.0
        %624 = vadd.xlane.f32.xlu0 %v623
        %v625 = vpop.xlane.xlu0 %624
        %v626 = vmul.f32 %v625, %v499
        %v627 = vsub.f32 %v621, %v626
        %v628 = vmul.f32 %v627, %v627
        %v629 = vsel %vm622, %v628, 0.0
        %630 = vadd.xlane.f32.xlu0 %v629
        %v631 = vpop.xlane.xlu0 %630
        %v632 = vmul.f32 %v631, %v499
        %v633 = vadd.f32 %v632, 1e-05
        %v634 = vrsqrt.pop %v633
        %v635 = vmul.f32 %v627, %v634
        %v636 = vmul.f32 %v635, %v524
        %v637 = vadd.f32 %v636, %v532
        %vm638 = vcmp.lt.s32.totalorder %v620, 16
        %v639 = vsel %vm638, 1, 0
        %vm640 = vcmp.eq.s32.totalorder %v639, 1
        %v641 = vsel %vm640, %v637, 0.0
        %643 = vrot.lane.b32.xlu0 %v641, 32
        %v644 = vpop.permute.xlu0 %643
        %646 = vrot.lane.b32.xlu0 %v641, 64
        %v647 = vpop.permute.xlu0 %646
        %649 = vrot.lane.b32.xlu0 %v641, 96
        %v650 = vpop.permute.xlu0 %649
        %v652 = vsel %vm492, %v641, %v644
        %v653 = vsel %vm566, %v652, %v647
        %v654 = vsel %vm569, %v653, %v650
        %655 = vst [vmem:[#allocation2 + $0x18] sm:$0x7] %v654
        %v656 = vld [vmem:[%s5] sm:$0x7f]
        %v657 = vld [vmem:[%s6] sm:$0x1]
        %v658 = vld [vmem:[#allocation2 + $0x5] sm:$0xff]
        %v659 = vld [vmem:[#allocation2 + $0xd] sm:$0xff]
        %v660 = vlaneseq
        %v661 = vshrl.u32 %v660, 7
        %v662 = vsub.s32 0, %v661
        %v663 = vrot.slane %v656, %v662
        %v664 = vmul.f32 %v658, %v663
        %v665 = vmul.f32 %v659, %v663
        %v666 = vadd.f32 %v664, 0.0
        %v667 = vadd.f32 %v665, 0.0
        %v668 = vld [vmem:[#allocation2 + $0x6] sm:$0xff]
        %v669 = vld [vmem:[#allocation2 + $0xe] sm:$0xff]
        %v670 = vlaneseq
        %v671 = vshrl.u32 %v670, 7
        %v672 = vsub.s32 1, %v671
        %v673 = vrot.slane %v656, %v672
        %v674 = vmul.f32 %v668, %v673
        %v675 = vmul.f32 %v669, %v673
        %v676 = vadd.f32 %v666, %v674
        %v677 = vadd.f32 %v667, %v675
        %v678 = vld [vmem:[#allocation2 + $0x7] sm:$0xff]
        %v679 = vld [vmem:[#allocation2 + $0xf] sm:$0xff]
        %v680 = vlaneseq
        %v681 = vshrl.u32 %v680, 7
        %v682 = vsub.s32 2, %v681
        %v683 = vrot.slane %v656, %v682
        %v684 = vmul.f32 %v678, %v683
        %v685 = vmul.f32 %v679, %v683
        %v686 = vadd.f32 %v676, %v684
        %v687 = vadd.f32 %v677, %v685
        %v688 = vld [vmem:[#allocation2 + $0x8] sm:$0xff]
        %v689 = vld [vmem:[#allocation2 + $0x10] sm:$0xff]
        %v690 = vlaneseq
        %v691 = vshrl.u32 %v690, 7
        %v692 = vsub.s32 3, %v691
        %v693 = vrot.slane %v656, %v692
        %v694 = vmul.f32 %v688, %v693
        %v695 = vmul.f32 %v689, %v693
        %v696 = vadd.f32 %v686, %v694
        %v697 = vadd.f32 %v687, %v695
        %v698 = vld [vmem:[#allocation2 + $0x9] sm:$0xff]
        %v699 = vld [vmem:[#allocation2 + $0x11] sm:$0xff]
        %v700 = vlaneseq
        %v701 = vshrl.u32 %v700, 7
        %v702 = vsub.s32 4, %v701
        %v703 = vrot.slane %v656, %v702
        %v704 = vmul.f32 %v698, %v703
        %v705 = vmul.f32 %v699, %v703
        %v706 = vadd.f32 %v696, %v704
        %v707 = vadd.f32 %v697, %v705
        %v708 = vld [vmem:[#allocation2 + $0xa] sm:$0xff]
        %v709 = vld [vmem:[#allocation2 + $0x12] sm:$0xff]
        %v710 = vlaneseq
        %v711 = vshrl.u32 %v710, 7
        %v712 = vsub.s32 5, %v711
        %v713 = vrot.slane %v656, %v712
        %v714 = vmul.f32 %v708, %v713
        %v715 = vmul.f32 %v709, %v713
        %v716 = vadd.f32 %v706, %v714
        %v717 = vadd.f32 %v707, %v715
        %v718 = vld [vmem:[#allocation2 + $0xb] sm:$0xff]
        %v719 = vld [vmem:[#allocation2 + $0x13] sm:$0xff]
        %v720 = vlaneseq
        %v721 = vshrl.u32 %v720, 7
        %v722 = vsub.s32 6, %v721
        %v723 = vrot.slane %v656, %v722
        %v724 = vmul.f32 %v718, %v723
        %v725 = vmul.f32 %v719, %v723
        %v726 = vadd.f32 %v716, %v724
        %v727 = vadd.f32 %v717, %v725
        %v729 = vlaneseq
        %v730 = vshrl.u32 %v729, 7
        %v731 = vsub.s32 0, %v730
        %v732 = vrot.slane %v657, %v731
        %v734 = vadd.f32 %v726, %v732
        %v735 = vadd.f32 %v727, %v732
        %vm736 = vcmp.ge.f32.partialorder %v734, 0.0
        %vm737 = vcmp.ge.f32.partialorder %v735, 0.0
        %v738 = vmul.f32 %v734, 0.3
        %v739 = vmul.f32 %v735, 0.3
        %v740 = vsel %vm736, %v734, %v738
        %v741 = vsel %vm737, %v735, %v739
        %v742 = vpack.c.bf16 %v741, %v740
        %v743 = vld [vmem:[%s7] sm:$0xf]
        %v744 = vld [vmem:[%s7 + $0x4] sm:$0xf]
        %v745 = vld [vmem:[%s7 + $0x8] sm:$0xf]
        %v746 = vld [vmem:[%s7 + $0xc] sm:$0xf]
        %v747 = vld [vmem:[%s7 + $0x10] sm:$0xf]
        %v748 = vld [vmem:[%s7 + $0x14] sm:$0xf]
        %v749 = vld [vmem:[%s7 + $0x18] sm:$0xf]
        %v750 = vld [vmem:[%s7 + $0x1c] sm:$0xf]
        %v751 = vld [vmem:[%s7 + $0x20] sm:$0xf]
        %v752 = vld [vmem:[%s7 + $0x24] sm:$0xf]
        %v753 = vld [vmem:[%s7 + $0x28] sm:$0xf]
        %v754 = vld [vmem:[%s7 + $0x2c] sm:$0xf]
        %v755 = vld [vmem:[%s7 + $0x30] sm:$0xf]
        %v756 = vld [vmem:[%s7 + $0x34] sm:$0xf]
        %v757 = vld [vmem:[%s7 + $0x38] sm:$0xf]
        %v758 = vld [vmem:[%s7 + $0x3c] sm:$0xf]
        %v759 = vld [vmem:[%s8] sm:$0x1]
        %v761 = vlaneseq
        %v762 = vshrl.u32 %v761, 7
        %v763 = vsub.s32 0, %v762
        %v764 = vrot.slane %v759, %v763
        %v782 = vunpack.c.l.b16 %v743
        %v783 = vunpack.c.l.b16 %v744
        %v784 = vunpack.c.l.b16 %v745
        %v785 = vunpack.c.l.b16 %v746
        %v786 = vunpack.c.l.b16 %v747
        %v787 = vunpack.c.l.b16 %v748
        %v788 = vunpack.c.l.b16 %v749
        %v789 = vunpack.c.l.b16 %v750
        %v790 = vunpack.c.l.b16 %v751
        %v791 = vunpack.c.l.b16 %v752
        %v792 = vunpack.c.l.b16 %v753
        %v793 = vunpack.c.l.b16 %v754
        %v794 = vunpack.c.l.b16 %v755
        %v795 = vunpack.c.l.b16 %v756
        %v796 = vunpack.c.l.b16 %v757
        %v797 = vunpack.c.l.b16 %v758
        %v798 = vpack.c.b16 %v783, %v782
        %v799 = vpack.c.b16 %v785, %v784
        %v800 = vpack.c.b16 %v787, %v786
        %v801 = vpack.c.b16 %v789, %v788
        %v802 = vpack.c.b16 %v791, %v790
        %v803 = vpack.c.b16 %v793, %v792
        %v804 = vpack.c.b16 %v795, %v794
        %v805 = vpack.c.b16 %v797, %v796
        %814 = vmatprep.subr.bf16.mxu0 0
        %815 = vmatpush1.bf16.msra.mxu0 %v798
        %816 = vmatprep.subr.bf16.mxu0 0
        %817 = vmatpush1.bf16.msra.mxu0 %v799
        %818 = vmatprep.subr.bf16.mxu0 0
        %819 = vmatpush1.bf16.msra.mxu0 %v800
        %820 = vmatprep.subr.bf16.mxu0 0
        %821 = vmatpush1.bf16.msra.mxu0 %v801
        %822 = vmatprep.subr.bf16.mxu0 0
        %823 = vmatpush1.bf16.msra.mxu0 %v802
        %824 = vmatprep.subr.bf16.mxu0 0
        %825 = vmatpush1.bf16.msra.mxu0 %v803
        %826 = vmatprep.subr.bf16.mxu0 0
        %827 = vmatpush1.bf16.msra.mxu0 %v804
        %828 = vmatprep.subr.bf16.mxu0 0
        %829 = vmatpush1.bf16.msra.mxu0 %v805
        %830 = vmatprep.subr.bf16.mxu0 0
        %831 = vmatpush1.bf16.msra.mxu0 0
        %832 = vmatprep.subr.bf16.mxu0 0
        %833 = vmatpush1.bf16.msra.mxu0 0
        %834 = vmatprep.subr.bf16.mxu0 0
        %835 = vmatpush1.bf16.msra.mxu0 0
        %836 = vmatprep.subr.bf16.mxu0 0
        %837 = vmatpush1.bf16.msra.mxu0 0
        %838 = vmatprep.subr.bf16.mxu0 0
        %839 = vmatpush1.bf16.msra.mxu0 0
        %840 = vmatprep.subr.bf16.mxu0 0
        %841 = vmatpush1.bf16.msra.mxu0 0
        %842 = vmatprep.subr.bf16.mxu0 0
        %843 = vmatpush1.bf16.msra.mxu0 0
        %844 = vmatprep.subr.bf16.mxu0 0
        %845 = vmatpush1.bf16.msra.mxu0 0
        %846 = vmatprep.mubr.bf16.mxu0 0
        %847 = vmatmul.mubr.bf16.gmra.mrb[0].mxu0 %v742
        %v848 = vpop.f32.mrb[0].mxu0
        %v849 = vadd.f32 %v764, %v848
        %v850 = vpop.f32.mrb[0].mxu0
        %v851 = vpop.f32.mrb[0].mxu0
        %v852 = vadd.f32 %v764, %v851
        %v853 = vpop.f32.mrb[0].mxu0
        %854 = vdwg.mxu0
        %855 = vst.msk [vmem:[%s436] sm:$0xff] %vm492, %v849
        %856 = vst.msk [vmem:[%s436 + $0x8] sm:$0xff] %vm492, %v852
        %s857 = sand.u32 %s271, 1
        %s858 = scalar_lea.sflag [#allocation4], %s857
        %s859 = sand.u32 %s271, 1
        %s860 = smul.addr %s859, 16
        %s861 = scalar_lea.vmem [#allocation3], %s860
        // Predicated region
        $region57: #{depthwise_conv_module_forward.1} parent=55 // pred_check
          %p862 = pneg %p281
        $region58: #{depthwise_conv_module_forward.1} parent=55 // pred_check_branch
          %864 = sbr.rel (%p862) target = $region60
        $region59: #{depthwise_conv_module_forward.1} parent=55 // pred_region
          %s865 = smul.u32 2, %s28
          %s867 = ssub.s32 256, 256
          %868 = vsyncadd %s858, %s867
          %s869 = smul.addr %s27, 2
          %s870 = sadd.s32 %s865, %s869
          %s871 = smul.addr %s870, 128
          %s872 = scalar_lea.hbm %s9, %s871
          %s873 = sshll.u32 %s861, 4
          %s874 = int_to_ptr.vmem [resolvable:$true] %s873
          %879 = dma.vmem_to_hbm [thread:$0]  %s874, 256, %s872, %s858, 128, 128, 8
        $region60: #{depthwise_conv_module_forward.1} parent=55 // pred_fallthru
          _
      $region56: #{depthwise_conv_module_forward.1} parent=5 // pred_fallthru
        _
      %p880 = scmp.le.s32.totalorder 2, %s18
      // Predicated region
      $region61: #{depthwise_conv_module_forward.1} parent=5 // pred_check
        %p881 = pneg %p880
      $region62: #{depthwise_conv_module_forward.1} parent=5 // pred_check_branch
        %883 = sbr.rel (%p881) target = $region64
      $region63: #{depthwise_conv_module_forward.1} parent=5 // pred_region
        %s884 = ssub.s32 %s18, 2
        // Predicated region
        $region65: #{depthwise_conv_module_forward.1} parent=63 // pred_check
          %p885 = pneg %p287
        $region66: #{depthwise_conv_module_forward.1} parent=63 // pred_check_branch
          %887 = sbr.rel (%p885) target = $region68
        $region67: #{depthwise_conv_module_forward.1} parent=63 // pred_region
          %s888 = sand.u32 %s272, 1
          %s889 = scalar_lea.sflag [#allocation4], %s888
          %s890 = sand.u32 %s272, 1
          %s891 = smul.addr %s890, 16
          %s892 = scalar_lea.vmem [#allocation3], %s891
          %893 = dma.done %s889, 256
        $region68: #{depthwise_conv_module_forward.1} parent=63 // pred_fallthru
          _
      $region64: #{depthwise_conv_module_forward.1} parent=5 // pred_fallthru
        _
    $region6: #{depthwise_conv_module_forward.1} parent=1 // loop_footer
      %s22 = sadd.s32 1, %s18
    $region7: #{depthwise_conv_module_forward.1} parent=1 // loop_footer_branch
      %17 = sbr.rel target = $region3
    $region8: #{depthwise_conv_module_forward.1} parent=1 // loop_exit
      _
    %894 = vsyncpa [#allocation4], 1
    %s895 = scalar_lea.sflag [#allocation4], 1
    %896 = vsyncpa %s895, 1

</llo_original>
